<compile_context>
chip_gen: v7x
topology: tpu7x:2x2x1
jax: 0.10.0
libtpu: 0.0.40
codegen_flags: <defaults>
</compile_context>

<pallas_src>
import jax
import jax.numpy as jnp
from jax.experimental import pallas as pl
from jax.experimental.pallas import tpu as pltpu


def _attention_agg_kernel(x_ref, w_ref, o_ref):
    # x_ref: (TB, T, E) in storage dtype; w_ref: (1, E); o_ref: (TB, E).
    x = x_ref[...]                       # keep native dtype (bf16 stays bf16)
    tb, t, e = x.shape

    # 1) att_projection Linear(E -> 1) on the MXU, batched over the tile.
    #    Bias is intentionally omitted: softmax(s + c) == softmax(s).
    w = jnp.broadcast_to(w_ref[...].astype(x.dtype)[None], (tb, 1, e))
    scores = jnp.einsum(
        "bqe,bte->bqt", w, x, preferred_element_type=jnp.float32
    )[:, 0, :]                                                     # (TB, T) f32

    # 2) softmax over the sequence axis, in f32 (tiny: TB x T).
    m = jnp.max(scores, axis=-1, keepdims=True)                    # (TB, 1)
    p = jnp.exp(scores - m)                                        # (TB, T)
    denom = jnp.sum(p, axis=-1, keepdims=True)                     # (TB, 1)
    alpha = p * pl.reciprocal(denom, approx=False)                 # (TB, T)

    # 3) aggregated = alpha @ x, batched on the MXU (no (T,E) f32 temporary).
    agg = jnp.einsum(
        "bqt,bte->bqe", alpha[:, None, :].astype(x.dtype), x,
        preferred_element_type=jnp.float32,
    )                                                              # (TB, 1, E)
    o_ref[...] = agg[:, 0, :].astype(o_ref.dtype)


def attention_aggregator(encodings, w, b=None, *, target_block_bytes=4 << 20):
    """encodings: (B, T, E); w: (E, 1) projection weight; b: (1, 1) bias.

    Returns (B, E), identical to the PyTorch forward. `b` is accepted for API
    parity but never applied: a scalar bias before softmax is a mathematical
    no-op for the output.
    """
    del b  # softmax shift-invariance: scalar bias cannot change the result.
    B, T, E = encodings.shape
    out_dtype = encodings.dtype
    itemsize = jnp.dtype(encodings.dtype).itemsize

    # --- lane-dense padding of the encoding axis (multiple of 128) ----------
    E_pad = max(128, -(-E // 128) * 128)
    if E_pad != E:
        encodings = jnp.pad(encodings, ((0, 0), (0, 0), (0, E_pad - E)))
        w = jnp.pad(w, ((0, E_pad - E), (0, 0)))
    w_row = w.reshape(1, E_pad)          # nn.Linear weight layout, lane-dense

    # --- batch tile: sublane-dense, ~target_block_bytes per x block ---------
    # TODO(synk): very long rows (T*E so large that even an 8-row block
    # overflows VMEM) need an inner sequence-tiled online-softmax variant.
    row_bytes = T * E_pad * itemsize
    tb = int(max(1, target_block_bytes // row_bytes))
    tb = max(8, tb - tb % 8)                       # multiple of 8 sublanes
    b_ceil8 = -(-B // 8) * 8
    tb = min(tb, b_ceil8)
    # Keep >= 2 grid steps when the batch allows it (v7x has 2 TensorCores
    # and the batch axis is marked "parallel").
    if tb == b_ceil8 and tb >= 16:
        half = tb // 2
        tb = max(8, half - half % 8)
    B_pad = -(-B // tb) * tb
    if B_pad != B:
        encodings = jnp.pad(encodings, ((0, B_pad - B), (0, 0), (0, 0)))

    grid = (B_pad // tb,)

    # Explicit VMEM budget: 2x-buffered x block + 2x-buffered out block +
    # weight + headroom, clamped so it is safe on v5e/v6e/v7x scoped VMEM.
    x_block_bytes = tb * T * E_pad * itemsize
    out_block_bytes = tb * E_pad * jnp.dtype(out_dtype).itemsize
    vmem_limit = 2 * (x_block_bytes + out_block_bytes) + E_pad * 4 + (8 << 20)
    vmem_limit = int(min(max(vmem_limit, 32 << 20), 48 << 20))

    out = pl.pallas_call(
        _attention_agg_kernel,
        out_shape=jax.ShapeDtypeStruct((B_pad, E_pad), out_dtype),
        grid=grid,
        in_specs=[
            pl.BlockSpec((tb, T, E_pad), lambda i: (i, 0, 0)),  # batch slab
            pl.BlockSpec((1, E_pad), lambda i: (0, 0)),          # shared weight
        ],
        out_specs=pl.BlockSpec((tb, E_pad), lambda i: (i, 0)),
        compiler_params=pltpu.CompilerParams(
            dimension_semantics=("parallel",),
            vmem_limit_bytes=vmem_limit,
        ),
    )(encodings, w_row)

    return out[:B, :E]


def _reference(encodings, w, b):
    # Pure-JAX reference mirroring the PyTorch forward exactly (incl. bias).
    proj = jnp.einsum("bte,eo->bto", encodings, w) + b[0, 0]   # (B, T, 1)
    alpha = jax.nn.softmax(proj[..., 0], axis=-1)              # (B, T)
    return jnp.einsum("bt,bte->be", alpha, encodings)          # (B, E)


def _check(key, B, T, E, atol=1e-4, rtol=1e-4):
    k_x, k_w, k_b = jax.random.split(key, 3)
    encodings = jax.random.normal(k_x, (B, T, E), dtype=jnp.float32)
    bound = 1.0 / (E ** 0.5)
    w = jax.random.uniform(k_w, (E, 1), jnp.float32, -bound, bound)
    b = jax.random.uniform(k_b, (1, 1), jnp.float32, -bound, bound)

    out = attention_aggregator(encodings, w, b)
    out = jax.block_until_ready(out)

    ref = _reference(encodings, w, b)
    assert out.shape == (B, E)
    assert jnp.allclose(out, ref, atol=atol, rtol=rtol), "mismatch vs reference"


if __name__ == "__main__":
    key = jax.random.PRNGKey(0)
    k1, k2 = jax.random.split(key)

    # Main case: lane/sublane-friendly shapes, 2 grid steps (megacore path).
    _check(k1, B=16, T=16, E=256)

    # Ragged case: exercises batch padding (B=5 -> 8) and E padding (96 -> 128).
    _check(k2, B=5, T=7, E=96)

    print("KERNEL_OK")
</pallas_src>

<mosaic_0001>
module attributes {stable_mosaic.version = 11 : i64} {
  func.func @_attention_agg_kernel(%arg0: i32, %arg1: memref<8x16x256xf32, #tpu.memory_space<vmem>>, %arg2: memref<1x256xf32, #tpu.memory_space<vmem>>, %arg3: memref<8x256xf32, #tpu.memory_space<vmem>>) attributes {dimension_semantics = [#tpu.dimension_semantics<parallel>], iteration_bounds = array<i64: 2>, scalar_prefetch = 0 : i64, scratch_operands = 0 : i64, tpu.core_type = #tpu.core_type<tc>, window_params = [{transform_indices = @transform_0, window_bounds = array<i64: 8, 16, 256>}, {pipeline_mode = #tpu.pipeline_mode<synchronous>, transform_indices = @transform_1, window_bounds = array<i64: 1, 256>}, {transform_indices = @transform_2, window_bounds = array<i64: 8, 256>}]} {
    %c0 = arith.constant 0 : index
    %c0_0 = arith.constant 0 : index
    %c0_1 = arith.constant 0 : index
    %0 = vector.load %arg1[%c0, %c0_0, %c0_1] : memref<8x16x256xf32, #tpu.memory_space<vmem>>, vector<8x16x256xf32>
    %c0_2 = arith.constant 0 : index
    %c0_3 = arith.constant 0 : index
    %1 = vector.load %arg2[%c0_2, %c0_3] : memref<1x256xf32, #tpu.memory_space<vmem>>, vector<1x256xf32>
    %2 = vector.shape_cast %1 : vector<1x256xf32> to vector<1x1x256xf32>
    %3 = vector.shape_cast %2 : vector<1x1x256xf32> to vector<1x1x256xf32>
    %4 = vector.broadcast %3 : vector<1x1x256xf32> to vector<8x1x256xf32>
    "tpu.trace_start"() <{level = 10 : i32, message = "bqe,bte->bqt"}> : () -> ()
    %cst = arith.constant dense<0.000000e+00> : vector<8x1x16xf32>
    %5 = tpu.matmul %4, %0, %cst {dimension_numbers = #tpu.dot_dimension_numbers<[2], [2], [1], [1], [0, 0, 0, 1, 1, 1], [0], [0]>} : vector<8x1x256xf32>, vector<8x16x256xf32>, vector<8x1x16xf32> -> vector<8x1x16xf32>
    "tpu.trace_stop"() : () -> ()
    %6 = vector.shape_cast %5 : vector<8x1x16xf32> to vector<8x16xf32>
    %cst_4 = arith.constant dense<0xFF800000> : vector<8xf32>
    %7 = vector.multi_reduction <maximumf>, %6, %cst_4 [1] : vector<8x16xf32> to vector<8xf32>
    %8 = vector.shape_cast %7 : vector<8xf32> to vector<8x1xf32>
    %9 = vector.broadcast %8 : vector<8x1xf32> to vector<8x16xf32>
    %10 = arith.subf %6, %9 : vector<8x16xf32>
    %11 = math.exp %10 : vector<8x16xf32>
    %cst_5 = arith.constant dense<0.000000e+00> : vector<8xf32>
    %12 = vector.multi_reduction <add>, %11, %cst_5 [1] : vector<8x16xf32> to vector<8xf32>
    %13 = vector.shape_cast %12 : vector<8xf32> to vector<8x1xf32>
    %14 = tpu.reciprocal %13 : vector<8x1xf32> -> vector<8x1xf32>
    %15 = vector.broadcast %14 : vector<8x1xf32> to vector<8x16xf32>
    %16 = arith.mulf %11, %15 : vector<8x16xf32>
    %17 = vector.shape_cast %16 : vector<8x16xf32> to vector<8x1x16xf32>
    "tpu.trace_start"() <{level = 10 : i32, message = "bqt,bte->bqe"}> : () -> ()
    %cst_6 = arith.constant dense<0.000000e+00> : vector<8x1x256xf32>
    %18 = tpu.matmul %17, %0, %cst_6 {dimension_numbers = #tpu.dot_dimension_numbers<[2], [1], [1], [2], [0, 0, 0, 1, 1, 2], [0], [0]>} : vector<8x1x16xf32>, vector<8x16x256xf32>, vector<8x1x256xf32> -> vector<8x1x256xf32>
    "tpu.trace_stop"() : () -> ()
    %19 = vector.shape_cast %18 : vector<8x1x256xf32> to vector<8x256xf32>
    %c0_7 = arith.constant 0 : index
    %c0_8 = arith.constant 0 : index
    %20 = vector.load %arg3[%c0_7, %c0_8] : memref<8x256xf32, #tpu.memory_space<vmem>>, vector<8x256xf32>
    tpu.vector_store %arg3[%c0_7, %c0_8], %19 {strides = array<i32>} : memref<8x256xf32, #tpu.memory_space<vmem>>, vector<8x256xf32>,
    return
  }
  func.func @transform_0(%arg0: i32) -> (i32, i32, i32) {
    %c0_i32 = arith.constant 0 : i32
    %c0_i32_0 = arith.constant 0 : i32
    %c0_i32_1 = arith.constant 0 : i32
    return %arg0, %c0_i32, %c0_i32_0 : i32, i32, i32
  }
  func.func @transform_1(%arg0: i32) -> (i32, i32) {
    %c0_i32 = arith.constant 0 : i32
    %c0_i32_0 = arith.constant 0 : i32
    %c0_i32_1 = arith.constant 0 : i32
    return %c0_i32, %c0_i32_0 : i32, i32
  }
  func.func @transform_2(%arg0: i32) -> (i32, i32) {
    %c0_i32 = arith.constant 0 : i32
    %c0_i32_0 = arith.constant 0 : i32
    return %arg0, %c0_i32 : i32, i32
  }
}

</mosaic_0001>

<llo_original>
// kernel: tpu_custom_call.1
$region0: #{tpu_custom_call.1}
  #allocation0 [shape = 'u32[]', space=smem, size = 0x4, offset = 0x4, fixed_abs, tag = 'smem constant byte address 0x4 - core index']
  #allocation1 [shape = 'u32[144,128]{1,0:T(1,128)}', space=vmem, size = 0x12000, scoped, tag = 'internal scratch']
  %s0 = inlined_call_operand.hbm [shape: f32[16,16,256], index: 0, kind: input, shape index: {}]
  %s1 = inlined_call_operand.vmem [shape: f32[1,256], index: 1, kind: input, shape index: {}]
  %s2 = inlined_call_operand.hbm [shape: f32[16,256], index: 2, kind: output, shape index: {}]
  %s3 = sld [smem:[#allocation0]]
  $region45: #{tpu_custom_call.1} parent=0
    _
  %s5 = ssub.s32 1, %s3
  %s6 = scalar_select 0, %s5, %s3
  $region1: #{tpu_custom_call.1} parent=0
    #allocation2 [shape = 'u8[262144]{0}', space=vmem, size = 0x40000, scoped, tag = 'input window, operand 0']
    #allocation3 [shape = 's32[2]{0}', space=sflag, size = 0x8, scoped, tag = 'scoped memory for tpu_custom_call.1']
    #allocation4 [shape = 's32[2]{0}', space=sflag, size = 0x8, scoped, tag = 'scoped memory for tpu_custom_call.1']
    #allocation5 [shape = 'u8[16384]{0}', space=vmem, size = 0x4000, scoped, tag = 'output window, operand 0']
    %7 = vsyncpa [#allocation3], 0
    %s8 = scalar_lea.sflag [#allocation3], 1
    %9 = vsyncpa %s8, 0
    %10 = vsyncpa [#allocation4], 0
    %s11 = scalar_lea.sflag [#allocation4], 1
    %12 = vsyncpa %s11, 0
    loop: start=0, step=1, limit=4
    $region2: #{tpu_custom_call.1} parent=1 // loop_pre_header
      _
    $region3: #{tpu_custom_call.1} parent=1 // loop_header
      %s14 = sphi 0, %s18
      %p15 = scmp.ge.s32.totalorder %s14, 4
      %s24 = sphi 0, %s26
      %s27 = sphi 0, %s24
      %s28 = sphi 0, %s27
      %s44 = sphi 0, %s28
      %s48 = sphi 0, %s48
      %s50 = sphi 0, %s48
      %s51 = sphi 0, %s50
      %s65 = sphi 0, %s51
      %s71 = sphi 0, %s73
      %s74 = sphi 0, %s71
      %s75 = sphi 0, %s74
      %s91 = sphi 0, %s75
    $region4: #{tpu_custom_call.1} parent=1 // loop_header_branch
      %17 = sbr.rel (%p15) target = $region8
    $region5: #{tpu_custom_call.1} parent=1 // loop_body
      %s19 = ssub.s32 %s14, 1
      %s20 = ssub.s32 %s14, 2
      %s21 = sadd.s32 %s14, 1
      %s22 = ssub.s32 %s14, %s21
      %p23 = scmp.eq.s32.totalorder %s22, 0
      %s25 = sadd.s32 %s24, 1
      %s26 = scalar_select %p23, %s24, %s25
      %p29 = pneg %p23
      %p30 = scmp.eq.s32.totalorder %s14, 1
      %p31 = por %p29, %p30
      %p32 = scmp.ne.s32.totalorder %s24, %s27
      %p33 = scmp.eq.s32.totalorder %s14, 0
      %p34 = por %p32, %p33
      %p35 = scmp.ne.s32.totalorder %s24, %s27
      %p36 = scmp.eq.s32.totalorder %s19, 1
      %p37 = por %p35, %p36
      %p38 = scmp.ne.s32.totalorder %s27, %s28
      %p39 = scmp.eq.s32.totalorder %s19, 0
      %p40 = por %p38, %p39
      %p41 = scmp.ne.s32.totalorder %s27, %s28
      %p42 = scmp.eq.s32.totalorder %s20, 1
      %p43 = por %p41, %p42
      %p45 = scmp.ne.s32.totalorder %s28, %s44
      %p46 = scmp.eq.s32.totalorder %s20, 0
      %p47 = por %p45, %p46
      %s49 = sadd.s32 %s48, 1
      %p52 = scmp.eq.s32.totalorder %s14, 1
      %p53 = scmp.ne.s32.totalorder %s48, %s50
      %p54 = scmp.eq.s32.totalorder %s14, 0
      %p55 = por %p53, %p54
      %p56 = scmp.ne.s32.totalorder %s48, %s50
      %p57 = scmp.eq.s32.totalorder %s19, 1
      %p58 = por %p56, %p57
      %p59 = scmp.ne.s32.totalorder %s50, %s51
      %p60 = scmp.eq.s32.totalorder %s19, 0
      %p61 = por %p59, %p60
      %p62 = scmp.ne.s32.totalorder %s50, %s51
      %p63 = scmp.eq.s32.totalorder %s20, 1
      %p64 = por %p62, %p63
      %p66 = scmp.ne.s32.totalorder %s51, %s65
      %p67 = scmp.eq.s32.totalorder %s20, 0
      %p68 = por %p66, %p67
      %s69 = ssub.s32 %s14, %s21
      %p70 = scmp.eq.s32.totalorder %s69, 0
      %s72 = sadd.s32 %s71, 1
      %s73 = scalar_select %p70, %s71, %s72
      %p76 = pneg %p70
      %p77 = scmp.eq.s32.totalorder %s14, 1
      %p78 = por %p76, %p77
      %p79 = scmp.ne.s32.totalorder %s71, %s74
      %p80 = scmp.eq.s32.totalorder %s14, 0
      %p81 = por %p79, %p80
      %p82 = scmp.ne.s32.totalorder %s71, %s74
      %p83 = scmp.eq.s32.totalorder %s19, 1
      %p84 = por %p82, %p83
      %p85 = scmp.ne.s32.totalorder %s74, %s75
      %p86 = scmp.eq.s32.totalorder %s19, 0
      %p87 = por %p85, %p86
      %p88 = scmp.ne.s32.totalorder %s74, %s75
      %p89 = scmp.eq.s32.totalorder %s20, 1
      %p90 = por %p88, %p89
      %p92 = scmp.ne.s32.totalorder %s75, %s91
      %p93 = scmp.eq.s32.totalorder %s20, 0
      %p94 = por %p92, %p93
      %p95 = scmp.le.s32.totalorder 1, %s14
      %p96 = scmp.lt.s32.totalorder %s14, 3
      %p97 = pnand %p95, %p96
      %p98 = pneg %p97
      // Predicated region
      $region9: #{tpu_custom_call.1} parent=5 // pred_check
        _
      $region10: #{tpu_custom_call.1} parent=5 // pred_check_branch
        %100 = sbr.rel (%p97) target = $region12
      $region11: #{tpu_custom_call.1} parent=5 // pred_region
        %s101 = ssub.s32 %s14, 1
        // Predicated region
        $region13: #{tpu_custom_call.1} parent=11 // pred_check
          %p102 = pneg %p61
        $region14: #{tpu_custom_call.1} parent=11 // pred_check_branch
          %104 = sbr.rel (%p102) target = $region16
        $region15: #{tpu_custom_call.1} parent=11 // pred_region
          _
        $region16: #{tpu_custom_call.1} parent=11 // pred_fallthru
          _
      $region12: #{tpu_custom_call.1} parent=5 // pred_fallthru
        _
      %p105 = scmp.lt.s32.totalorder %s14, 2
      // Predicated region
      $region17: #{tpu_custom_call.1} parent=5 // pred_check
        %p106 = pneg %p105
      $region18: #{tpu_custom_call.1} parent=5 // pred_check_branch
        %108 = sbr.rel (%p106) target = $region20
      $region19: #{tpu_custom_call.1} parent=5 // pred_region
        // Predicated region
        $region21: #{tpu_custom_call.1} parent=19 // pred_check
          %p109 = pneg %p34
        $region22: #{tpu_custom_call.1} parent=19 // pred_check_branch
          %111 = sbr.rel (%p109) target = $region24
        $region23: #{tpu_custom_call.1} parent=19 // pred_region
          %s112 = sand.u32 %s24, 1
          %s113 = scalar_lea.sflag [#allocation3], %s112
          %s114 = sand.u32 %s24, 1
          %s115 = smul.addr %s114, 256
          %s116 = scalar_lea.vmem [#allocation2], %s115
          %s117 = smul.u32 8, %s14
          %s119 = ssub.s32 4096, 4096
          %120 = vsyncadd %s113, %s119
          %s121 = smul.addr %s117, 4
          %s122 = smul.addr %s121, 128
          %s123 = scalar_lea.hbm %s0, %s122
          %s124 = sshll.u32 %s116, 4
          %s125 = int_to_ptr.vmem [resolvable:$true] %s124
          %130 = dma.hbm_to_vmem [thread:$0]  %s123, 4096, %s125, %s113, 256, 256, 16
        $region24: #{tpu_custom_call.1} parent=19 // pred_fallthru
          _
      $region20: #{tpu_custom_call.1} parent=5 // pred_fallthru
        _
      %p131 = scmp.le.s32.totalorder 1, %s14
      %p132 = scmp.lt.s32.totalorder %s14, 3
      %p133 = pnand %p131, %p132
      %p134 = pneg %p133
      // Predicated region
      $region25: #{tpu_custom_call.1} parent=5 // pred_check
        _
      $region26: #{tpu_custom_call.1} parent=5 // pred_check_branch
        %136 = sbr.rel (%p133) target = $region28
      $region27: #{tpu_custom_call.1} parent=5 // pred_region
        %s137 = ssub.s32 %s14, 1
        %s138 = sand.u32 %s27, 1
        %s139 = scalar_lea.sflag [#allocation3], %s138
        %s140 = sand.u32 %s27, 1
        %s141 = smul.addr %s140, 256
        %s142 = scalar_lea.vmem [#allocation2], %s141
        // Predicated region
        $region29: #{tpu_custom_call.1} parent=27 // pred_check
          %p143 = pneg %p40
        $region30: #{tpu_custom_call.1} parent=27 // pred_check_branch
          %145 = sbr.rel (%p143) target = $region32
        $region31: #{tpu_custom_call.1} parent=27 // pred_region
          %146 = dma.done %s139, 4096
        $region32: #{tpu_custom_call.1} parent=27 // pred_fallthru
          _
        %s147 = sand.u32 %s27, 1
        %s148 = scalar_lea.sflag [#allocation3], %s147
        %s149 = sand.u32 %s27, 1
        %s150 = smul.addr %s149, 256
        %s151 = scalar_lea.vmem [#allocation2], %s150
        %p152 = pneg %p40
        %p153 = pneg %p37
        %p154 = pneg %p61
        %p155 = pneg %p58
        %p156 = pneg %p87
        %p157 = pneg %p84
        %s158 = sand.u32 %s74, 1
        %s159 = scalar_lea.sflag [#allocation4], %s158
        %s160 = sand.u32 %s74, 1
        %s161 = smul.addr %s160, 16
        %s162 = scalar_lea.vmem [#allocation5], %s161
        %s163 = smul.u32 8, %s19
        %v164 = vld [vmem:[%s142] sm:$0xff]
        %v165 = vld [vmem:[%s142 + $0x8] sm:$0xff]
        %v166 = vld [vmem:[%s142 + $0x10] sm:$0xff]
        %v167 = vld [vmem:[%s142 + $0x18] sm:$0xff]
        %v168 = vld [vmem:[%s142 + $0x20] sm:$0xff]
        %v169 = vld [vmem:[%s142 + $0x28] sm:$0xff]
        %v170 = vld [vmem:[%s142 + $0x30] sm:$0xff]
        %v171 = vld [vmem:[%s142 + $0x38] sm:$0xff]
        %v172 = vld [vmem:[%s142 + $0x40] sm:$0xff]
        %v173 = vld [vmem:[%s142 + $0x48] sm:$0xff]
        %v174 = vld [vmem:[%s142 + $0x50] sm:$0xff]
        %v175 = vld [vmem:[%s142 + $0x58] sm:$0xff]
        %v176 = vld [vmem:[%s142 + $0x60] sm:$0xff]
        %v177 = vld [vmem:[%s142 + $0x68] sm:$0xff]
        %v178 = vld [vmem:[%s142 + $0x70] sm:$0xff]
        %v179 = vld [vmem:[%s142 + $0x78] sm:$0xff]
        %v180 = vld [vmem:[%s142 + $0x80] sm:$0xff]
        %v181 = vld [vmem:[%s142 + $0x88] sm:$0xff]
        %v182 = vld [vmem:[%s142 + $0x90] sm:$0xff]
        %v183 = vld [vmem:[%s142 + $0x98] sm:$0xff]
        %v184 = vld [vmem:[%s142 + $0xa0] sm:$0xff]
        %v185 = vld [vmem:[%s142 + $0xa8] sm:$0xff]
        %v186 = vld [vmem:[%s142 + $0xb0] sm:$0xff]
        %v187 = vld [vmem:[%s142 + $0xb8] sm:$0xff]
        %v188 = vld [vmem:[%s142 + $0xc0] sm:$0xff]
        %v189 = vld [vmem:[%s142 + $0xc8] sm:$0xff]
        %v190 = vld [vmem:[%s142 + $0xd0] sm:$0xff]
        %v191 = vld [vmem:[%s142 + $0xd8] sm:$0xff]
        %v192 = vld [vmem:[%s142 + $0xe0] sm:$0xff]
        %v193 = vld [vmem:[%s142 + $0xe8] sm:$0xff]
        %v194 = vld [vmem:[%s142 + $0xf0] sm:$0xff]
        %v195 = vld [vmem:[%s142 + $0xf8] sm:$0xff]
        %v196 = vld [vmem:[%s1] sm:$0x3]
        %v198 = vlaneseq
        %v199 = vshrl.u32 %v198, 7
        %v200 = vsub.s32 0, %v199
        %v201 = vrot.slane %v196, %v200
        %v202 = vlaneseq
        %v203 = vshrl.u32 %v202, 7
        %v204 = vsub.s32 1, %v203
        %v205 = vrot.slane %v196, %v204
        %208 = vmatprep.subr.mxu0 %v165
        %209 = vmatpush1.xpose.msra.mxu0 %v164
        %210 = vmatprep.subr.mxu0 %v167
        %211 = vmatpush1.xpose.msra.mxu0 %v166
        %212 = vmatprep.subr.mxu0 0.0
        %213 = vmatpush1.xpose.msra.mxu0 0.0
        %214 = vmatprep.subr.mxu0 0.0
        %215 = vmatpush1.xpose.msra.mxu0 0.0
        %216 = vmatprep.subr.mxu0 0.0
        %217 = vmatpush1.xpose.msra.mxu0 0.0
        %218 = vmatprep.subr.mxu0 0.0
        %219 = vmatpush1.xpose.msra.mxu0 0.0
        %220 = vmatprep.subr.mxu0 0.0
        %221 = vmatpush1.xpose.msra.mxu0 0.0
        %222 = vmatprep.subr.mxu0 0.0
        %223 = vmatpush1.xpose.msra.mxu0 0.0
        %224 = vmatprep.subr.mxu0 0.0
        %225 = vmatpush1.xpose.msra.mxu0 0.0
        %226 = vmatprep.subr.mxu0 0.0
        %227 = vmatpush1.xpose.msra.mxu0 0.0
        %228 = vmatprep.subr.mxu0 0.0
        %229 = vmatpush1.xpose.msra.mxu0 0.0
        %230 = vmatprep.subr.mxu0 0.0
        %231 = vmatpush1.xpose.msra.mxu0 0.0
        %232 = vmatprep.subr.mxu0 0.0
        %233 = vmatpush1.xpose.msra.mxu0 0.0
        %234 = vmatprep.subr.mxu0 0.0
        %235 = vmatpush1.xpose.msra.mxu0 0.0
        %236 = vmatprep.subr.mxu0 0.0
        %237 = vmatpush1.xpose.msra.mxu0 0.0
        %238 = vmatprep.subr.mxu0 0.0
        %239 = vmatpush1.xpose.msra.mxu0 0.0
        %240 = vmatprep.subr.mxu0 0.0
        %241 = vmatpush1.xpose.msra.mxu0 0.0
        %242 = vmatprep.subr.mxu0 0.0
        %243 = vmatpush1.xpose.msra.mxu0 0.0
        %244 = vmatprep.subr.mxu0 0.0
        %245 = vmatpush1.xpose.msra.mxu0 0.0
        %246 = vmatprep.subr.mxu0 0.0
        %247 = vmatpush1.xpose.msra.mxu0 0.0
        %248 = vmatprep.subr.mxu0 0.0
        %249 = vmatpush1.xpose.msra.mxu0 0.0
        %250 = vmatprep.subr.mxu0 0.0
        %251 = vmatpush1.xpose.msra.mxu0 0.0
        %252 = vmatprep.subr.mxu0 0.0
        %253 = vmatpush1.xpose.msra.mxu0 0.0
        %254 = vmatprep.subr.mxu0 0.0
        %255 = vmatpush1.xpose.msra.mxu0 0.0
        %256 = vmatprep.subr.mxu0 0.0
        %257 = vmatpush1.xpose.msra.mxu0 0.0
        %258 = vmatprep.subr.mxu0 0.0
        %259 = vmatpush1.xpose.msra.mxu0 0.0
        %260 = vmatprep.subr.mxu0 0.0
        %261 = vmatpush1.xpose.msra.mxu0 0.0
        %262 = vmatprep.subr.mxu0 0.0
        %263 = vmatpush1.xpose.msra.mxu0 0.0
        %264 = vmatprep.subr.mxu0 0.0
        %265 = vmatpush1.xpose.msra.mxu0 0.0
        %266 = vmatprep.subr.mxu0 0.0
        %267 = vmatpush1.xpose.msra.mxu0 0.0
        %268 = vmatprep.subr.mxu0 0.0
        %269 = vmatpush1.xpose.msra.mxu0 0.0
        %270 = vmatprep.subr.mxu0 0.0
        %271 = vmatpush1.xpose.msra.mxu0 0.0
        %272 = vmatprep.mubr.f32.mxu0 %v205
        %273 = vmatmul.mubr.f32.gmra.mrb[0].mxu0 %v201
        %v274 = vpop.f32.mrb[0].mxu0
        %v275 = vadd.f32 0.0, %v274
        %v276 = vpop.f32.mrb[0].mxu0
        %277 = vdwg.mxu0
        %278 = vmatprep.subr.mxu0 %v169
        %279 = vmatpush1.xpose.msra.mxu0 %v168
        %280 = vmatprep.subr.mxu0 %v171
        %281 = vmatpush1.xpose.msra.mxu0 %v170
        %282 = vmatprep.subr.mxu0 0.0
        %283 = vmatpush1.xpose.msra.mxu0 0.0
        %284 = vmatprep.subr.mxu0 0.0
        %285 = vmatpush1.xpose.msra.mxu0 0.0
        %286 = vmatprep.subr.mxu0 0.0
        %287 = vmatpush1.xpose.msra.mxu0 0.0
        %288 = vmatprep.subr.mxu0 0.0
        %289 = vmatpush1.xpose.msra.mxu0 0.0
        %290 = vmatprep.subr.mxu0 0.0
        %291 = vmatpush1.xpose.msra.mxu0 0.0
        %292 = vmatprep.subr.mxu0 0.0
        %293 = vmatpush1.xpose.msra.mxu0 0.0
        %294 = vmatprep.subr.mxu0 0.0
        %295 = vmatpush1.xpose.msra.mxu0 0.0
        %296 = vmatprep.subr.mxu0 0.0
        %297 = vmatpush1.xpose.msra.mxu0 0.0
        %298 = vmatprep.subr.mxu0 0.0
        %299 = vmatpush1.xpose.msra.mxu0 0.0
        %300 = vmatprep.subr.mxu0 0.0
        %301 = vmatpush1.xpose.msra.mxu0 0.0
        %302 = vmatprep.subr.mxu0 0.0
        %303 = vmatpush1.xpose.msra.mxu0 0.0
        %304 = vmatprep.subr.mxu0 0.0
        %305 = vmatpush1.xpose.msra.mxu0 0.0
        %306 = vmatprep.subr.mxu0 0.0
        %307 = vmatpush1.xpose.msra.mxu0 0.0
        %308 = vmatprep.subr.mxu0 0.0
        %309 = vmatpush1.xpose.msra.mxu0 0.0
        %310 = vmatprep.subr.mxu0 0.0
        %311 = vmatpush1.xpose.msra.mxu0 0.0
        %312 = vmatprep.subr.mxu0 0.0
        %313 = vmatpush1.xpose.msra.mxu0 0.0
        %314 = vmatprep.subr.mxu0 0.0
        %315 = vmatpush1.xpose.msra.mxu0 0.0
        %316 = vmatprep.subr.mxu0 0.0
        %317 = vmatpush1.xpose.msra.mxu0 0.0
        %318 = vmatprep.subr.mxu0 0.0
        %319 = vmatpush1.xpose.msra.mxu0 0.0
        %320 = vmatprep.subr.mxu0 0.0
        %321 = vmatpush1.xpose.msra.mxu0 0.0
        %322 = vmatprep.subr.mxu0 0.0
        %323 = vmatpush1.xpose.msra.mxu0 0.0
        %324 = vmatprep.subr.mxu0 0.0
        %325 = vmatpush1.xpose.msra.mxu0 0.0
        %326 = vmatprep.subr.mxu0 0.0
        %327 = vmatpush1.xpose.msra.mxu0 0.0
        %328 = vmatprep.subr.mxu0 0.0
        %329 = vmatpush1.xpose.msra.mxu0 0.0
        %330 = vmatprep.subr.mxu0 0.0
        %331 = vmatpush1.xpose.msra.mxu0 0.0
        %332 = vmatprep.subr.mxu0 0.0
        %333 = vmatpush1.xpose.msra.mxu0 0.0
        %334 = vmatprep.subr.mxu0 0.0
        %335 = vmatpush1.xpose.msra.mxu0 0.0
        %336 = vmatprep.subr.mxu0 0.0
        %337 = vmatpush1.xpose.msra.mxu0 0.0
        %338 = vmatprep.subr.mxu0 0.0
        %339 = vmatpush1.xpose.msra.mxu0 0.0
        %340 = vmatprep.subr.mxu0 0.0
        %341 = vmatpush1.xpose.msra.mxu0 0.0
        %342 = vmatprep.mubr.f32.mxu0 %v205
        %343 = vmatmul.mubr.f32.gmra.mrb[0].mxu0 %v201
        %v344 = vpop.f32.mrb[0].mxu0
        %v345 = vadd.f32 0.0, %v344
        %v346 = vpop.f32.mrb[0].mxu0
        %347 = vdwg.mxu0
        %348 = vmatprep.subr.mxu0 %v173
        %349 = vmatpush1.xpose.msra.mxu0 %v172
        %350 = vmatprep.subr.mxu0 %v175
        %351 = vmatpush1.xpose.msra.mxu0 %v174
        %352 = vmatprep.subr.mxu0 0.0
        %353 = vmatpush1.xpose.msra.mxu0 0.0
        %354 = vmatprep.subr.mxu0 0.0
        %355 = vmatpush1.xpose.msra.mxu0 0.0
        %356 = vmatprep.subr.mxu0 0.0
        %357 = vmatpush1.xpose.msra.mxu0 0.0
        %358 = vmatprep.subr.mxu0 0.0
        %359 = vmatpush1.xpose.msra.mxu0 0.0
        %360 = vmatprep.subr.mxu0 0.0
        %361 = vmatpush1.xpose.msra.mxu0 0.0
        %362 = vmatprep.subr.mxu0 0.0
        %363 = vmatpush1.xpose.msra.mxu0 0.0
        %364 = vmatprep.subr.mxu0 0.0
        %365 = vmatpush1.xpose.msra.mxu0 0.0
        %366 = vmatprep.subr.mxu0 0.0
        %367 = vmatpush1.xpose.msra.mxu0 0.0
        %368 = vmatprep.subr.mxu0 0.0
        %369 = vmatpush1.xpose.msra.mxu0 0.0
        %370 = vmatprep.subr.mxu0 0.0
        %371 = vmatpush1.xpose.msra.mxu0 0.0
        %372 = vmatprep.subr.mxu0 0.0
        %373 = vmatpush1.xpose.msra.mxu0 0.0
        %374 = vmatprep.subr.mxu0 0.0
        %375 = vmatpush1.xpose.msra.mxu0 0.0
        %376 = vmatprep.subr.mxu0 0.0
        %377 = vmatpush1.xpose.msra.mxu0 0.0
        %378 = vmatprep.subr.mxu0 0.0
        %379 = vmatpush1.xpose.msra.mxu0 0.0
        %380 = vmatprep.subr.mxu0 0.0
        %381 = vmatpush1.xpose.msra.mxu0 0.0
        %382 = vmatprep.subr.mxu0 0.0
        %383 = vmatpush1.xpose.msra.mxu0 0.0
        %384 = vmatprep.subr.mxu0 0.0
        %385 = vmatpush1.xpose.msra.mxu0 0.0
        %386 = vmatprep.subr.mxu0 0.0
        %387 = vmatpush1.xpose.msra.mxu0 0.0
        %388 = vmatprep.subr.mxu0 0.0
        %389 = vmatpush1.xpose.msra.mxu0 0.0
        %390 = vmatprep.subr.mxu0 0.0
        %391 = vmatpush1.xpose.msra.mxu0 0.0
        %392 = vmatprep.subr.mxu0 0.0
        %393 = vmatpush1.xpose.msra.mxu0 0.0
        %394 = vmatprep.subr.mxu0 0.0
        %395 = vmatpush1.xpose.msra.mxu0 0.0
        %396 = vmatprep.subr.mxu0 0.0
        %397 = vmatpush1.xpose.msra.mxu0 0.0
        %398 = vmatprep.subr.mxu0 0.0
        %399 = vmatpush1.xpose.msra.mxu0 0.0
        %400 = vmatprep.subr.mxu0 0.0
        %401 = vmatpush1.xpose.msra.mxu0 0.0
        %402 = vmatprep.subr.mxu0 0.0
        %403 = vmatpush1.xpose.msra.mxu0 0.0
        %404 = vmatprep.subr.mxu0 0.0
        %405 = vmatpush1.xpose.msra.mxu0 0.0
        %406 = vmatprep.subr.mxu0 0.0
        %407 = vmatpush1.xpose.msra.mxu0 0.0
        %408 = vmatprep.subr.mxu0 0.0
        %409 = vmatpush1.xpose.msra.mxu0 0.0
        %410 = vmatprep.subr.mxu0 0.0
        %411 = vmatpush1.xpose.msra.mxu0 0.0
        %412 = vmatprep.mubr.f32.mxu0 %v205
        %413 = vmatmul.mubr.f32.gmra.mrb[0].mxu0 %v201
        %v414 = vpop.f32.mrb[0].mxu0
        %v415 = vadd.f32 0.0, %v414
        %v416 = vpop.f32.mrb[0].mxu0
        %417 = vdwg.mxu0
        %418 = vmatprep.subr.mxu0 %v177
        %419 = vmatpush1.xpose.msra.mxu0 %v176
        %420 = vmatprep.subr.mxu0 %v179
        %421 = vmatpush1.xpose.msra.mxu0 %v178
        %422 = vmatprep.subr.mxu0 0.0
        %423 = vmatpush1.xpose.msra.mxu0 0.0
        %424 = vmatprep.subr.mxu0 0.0
        %425 = vmatpush1.xpose.msra.mxu0 0.0
        %426 = vmatprep.subr.mxu0 0.0
        %427 = vmatpush1.xpose.msra.mxu0 0.0
        %428 = vmatprep.subr.mxu0 0.0
        %429 = vmatpush1.xpose.msra.mxu0 0.0
        %430 = vmatprep.subr.mxu0 0.0
        %431 = vmatpush1.xpose.msra.mxu0 0.0
        %432 = vmatprep.subr.mxu0 0.0
        %433 = vmatpush1.xpose.msra.mxu0 0.0
        %434 = vmatprep.subr.mxu0 0.0
        %435 = vmatpush1.xpose.msra.mxu0 0.0
        %436 = vmatprep.subr.mxu0 0.0
        %437 = vmatpush1.xpose.msra.mxu0 0.0
        %438 = vmatprep.subr.mxu0 0.0
        %439 = vmatpush1.xpose.msra.mxu0 0.0
        %440 = vmatprep.subr.mxu0 0.0
        %441 = vmatpush1.xpose.msra.mxu0 0.0
        %442 = vmatprep.subr.mxu0 0.0
        %443 = vmatpush1.xpose.msra.mxu0 0.0
        %444 = vmatprep.subr.mxu0 0.0
        %445 = vmatpush1.xpose.msra.mxu0 0.0
        %446 = vmatprep.subr.mxu0 0.0
        %447 = vmatpush1.xpose.msra.mxu0 0.0
        %448 = vmatprep.subr.mxu0 0.0
        %449 = vmatpush1.xpose.msra.mxu0 0.0
        %450 = vmatprep.subr.mxu0 0.0
        %451 = vmatpush1.xpose.msra.mxu0 0.0
        %452 = vmatprep.subr.mxu0 0.0
        %453 = vmatpush1.xpose.msra.mxu0 0.0
        %454 = vmatprep.subr.mxu0 0.0
        %455 = vmatpush1.xpose.msra.mxu0 0.0
        %456 = vmatprep.subr.mxu0 0.0
        %457 = vmatpush1.xpose.msra.mxu0 0.0
        %458 = vmatprep.subr.mxu0 0.0
        %459 = vmatpush1.xpose.msra.mxu0 0.0
        %460 = vmatprep.subr.mxu0 0.0
        %461 = vmatpush1.xpose.msra.mxu0 0.0
        %462 = vmatprep.subr.mxu0 0.0
        %463 = vmatpush1.xpose.msra.mxu0 0.0
        %464 = vmatprep.subr.mxu0 0.0
        %465 = vmatpush1.xpose.msra.mxu0 0.0
        %466 = vmatprep.subr.mxu0 0.0
        %467 = vmatpush1.xpose.msra.mxu0 0.0
        %468 = vmatprep.subr.mxu0 0.0
        %469 = vmatpush1.xpose.msra.mxu0 0.0
        %470 = vmatprep.subr.mxu0 0.0
        %471 = vmatpush1.xpose.msra.mxu0 0.0
        %472 = vmatprep.subr.mxu0 0.0
        %473 = vmatpush1.xpose.msra.mxu0 0.0
        %474 = vmatprep.subr.mxu0 0.0
        %475 = vmatpush1.xpose.msra.mxu0 0.0
        %476 = vmatprep.subr.mxu0 0.0
        %477 = vmatpush1.xpose.msra.mxu0 0.0
        %478 = vmatprep.subr.mxu0 0.0
        %479 = vmatpush1.xpose.msra.mxu0 0.0
        %480 = vmatprep.subr.mxu0 0.0
        %481 = vmatpush1.xpose.msra.mxu0 0.0
        %482 = vmatprep.mubr.f32.mxu0 %v205
        %483 = vmatmul.mubr.f32.gmra.mrb[0].mxu0 %v201
        %v484 = vpop.f32.mrb[0].mxu0
        %v485 = vadd.f32 0.0, %v484
        %v486 = vpop.f32.mrb[0].mxu0
        %487 = vdwg.mxu0
        %488 = vmatprep.subr.mxu0 %v181
        %489 = vmatpush1.xpose.msra.mxu0 %v180
        %490 = vmatprep.subr.mxu0 %v183
        %491 = vmatpush1.xpose.msra.mxu0 %v182
        %492 = vmatprep.subr.mxu0 0.0
        %493 = vmatpush1.xpose.msra.mxu0 0.0
        %494 = vmatprep.subr.mxu0 0.0
        %495 = vmatpush1.xpose.msra.mxu0 0.0
        %496 = vmatprep.subr.mxu0 0.0
        %497 = vmatpush1.xpose.msra.mxu0 0.0
        %498 = vmatprep.subr.mxu0 0.0
        %499 = vmatpush1.xpose.msra.mxu0 0.0
        %500 = vmatprep.subr.mxu0 0.0
        %501 = vmatpush1.xpose.msra.mxu0 0.0
        %502 = vmatprep.subr.mxu0 0.0
        %503 = vmatpush1.xpose.msra.mxu0 0.0
        %504 = vmatprep.subr.mxu0 0.0
        %505 = vmatpush1.xpose.msra.mxu0 0.0
        %506 = vmatprep.subr.mxu0 0.0
        %507 = vmatpush1.xpose.msra.mxu0 0.0
        %508 = vmatprep.subr.mxu0 0.0
        %509 = vmatpush1.xpose.msra.mxu0 0.0
        %510 = vmatprep.subr.mxu0 0.0
        %511 = vmatpush1.xpose.msra.mxu0 0.0
        %512 = vmatprep.subr.mxu0 0.0
        %513 = vmatpush1.xpose.msra.mxu0 0.0
        %514 = vmatprep.subr.mxu0 0.0
        %515 = vmatpush1.xpose.msra.mxu0 0.0
        %516 = vmatprep.subr.mxu0 0.0
        %517 = vmatpush1.xpose.msra.mxu0 0.0
        %518 = vmatprep.subr.mxu0 0.0
        %519 = vmatpush1.xpose.msra.mxu0 0.0
        %520 = vmatprep.subr.mxu0 0.0
        %521 = vmatpush1.xpose.msra.mxu0 0.0
        %522 = vmatprep.subr.mxu0 0.0
        %523 = vmatpush1.xpose.msra.mxu0 0.0
        %524 = vmatprep.subr.mxu0 0.0
        %525 = vmatpush1.xpose.msra.mxu0 0.0
        %526 = vmatprep.subr.mxu0 0.0
        %527 = vmatpush1.xpose.msra.mxu0 0.0
        %528 = vmatprep.subr.mxu0 0.0
        %529 = vmatpush1.xpose.msra.mxu0 0.0
        %530 = vmatprep.subr.mxu0 0.0
        %531 = vmatpush1.xpose.msra.mxu0 0.0
        %532 = vmatprep.subr.mxu0 0.0
        %533 = vmatpush1.xpose.msra.mxu0 0.0
        %534 = vmatprep.subr.mxu0 0.0
        %535 = vmatpush1.xpose.msra.mxu0 0.0
        %536 = vmatprep.subr.mxu0 0.0
        %537 = vmatpush1.xpose.msra.mxu0 0.0
        %538 = vmatprep.subr.mxu0 0.0
        %539 = vmatpush1.xpose.msra.mxu0 0.0
        %540 = vmatprep.subr.mxu0 0.0
        %541 = vmatpush1.xpose.msra.mxu0 0.0
        %542 = vmatprep.subr.mxu0 0.0
        %543 = vmatpush1.xpose.msra.mxu0 0.0
        %544 = vmatprep.subr.mxu0 0.0
        %545 = vmatpush1.xpose.msra.mxu0 0.0
        %546 = vmatprep.subr.mxu0 0.0
        %547 = vmatpush1.xpose.msra.mxu0 0.0
        %548 = vmatprep.subr.mxu0 0.0
        %549 = vmatpush1.xpose.msra.mxu0 0.0
        %550 = vmatprep.subr.mxu0 0.0
        %551 = vmatpush1.xpose.msra.mxu0 0.0
        %552 = vmatprep.mubr.f32.mxu0 %v205
        %553 = vmatmul.mubr.f32.gmra.mrb[0].mxu0 %v201
        %v554 = vpop.f32.mrb[0].mxu0
        %v555 = vadd.f32 0.0, %v554
        %v556 = vpop.f32.mrb[0].mxu0
        %557 = vdwg.mxu0
        %558 = vmatprep.subr.mxu0 %v185
        %559 = vmatpush1.xpose.msra.mxu0 %v184
        %560 = vmatprep.subr.mxu0 %v187
        %561 = vmatpush1.xpose.msra.mxu0 %v186
        %562 = vmatprep.subr.mxu0 0.0
        %563 = vmatpush1.xpose.msra.mxu0 0.0
        %564 = vmatprep.subr.mxu0 0.0
        %565 = vmatpush1.xpose.msra.mxu0 0.0
        %566 = vmatprep.subr.mxu0 0.0
        %567 = vmatpush1.xpose.msra.mxu0 0.0
        %568 = vmatprep.subr.mxu0 0.0
        %569 = vmatpush1.xpose.msra.mxu0 0.0
        %570 = vmatprep.subr.mxu0 0.0
        %571 = vmatpush1.xpose.msra.mxu0 0.0
        %572 = vmatprep.subr.mxu0 0.0
        %573 = vmatpush1.xpose.msra.mxu0 0.0
        %574 = vmatprep.subr.mxu0 0.0
        %575 = vmatpush1.xpose.msra.mxu0 0.0
        %576 = vmatprep.subr.mxu0 0.0
        %577 = vmatpush1.xpose.msra.mxu0 0.0
        %578 = vmatprep.subr.mxu0 0.0
        %579 = vmatpush1.xpose.msra.mxu0 0.0
        %580 = vmatprep.subr.mxu0 0.0
        %581 = vmatpush1.xpose.msra.mxu0 0.0
        %582 = vmatprep.subr.mxu0 0.0
        %583 = vmatpush1.xpose.msra.mxu0 0.0
        %584 = vmatprep.subr.mxu0 0.0
        %585 = vmatpush1.xpose.msra.mxu0 0.0
        %586 = vmatprep.subr.mxu0 0.0
        %587 = vmatpush1.xpose.msra.mxu0 0.0
        %588 = vmatprep.subr.mxu0 0.0
        %589 = vmatpush1.xpose.msra.mxu0 0.0
        %590 = vmatprep.subr.mxu0 0.0
        %591 = vmatpush1.xpose.msra.mxu0 0.0
        %592 = vmatprep.subr.mxu0 0.0
        %593 = vmatpush1.xpose.msra.mxu0 0.0
        %594 = vmatprep.subr.mxu0 0.0
        %595 = vmatpush1.xpose.msra.mxu0 0.0
        %596 = vmatprep.subr.mxu0 0.0
        %597 = vmatpush1.xpose.msra.mxu0 0.0
        %598 = vmatprep.subr.mxu0 0.0
        %599 = vmatpush1.xpose.msra.mxu0 0.0
        %600 = vmatprep.subr.mxu0 0.0
        %601 = vmatpush1.xpose.msra.mxu0 0.0
        %602 = vmatprep.subr.mxu0 0.0
        %603 = vmatpush1.xpose.msra.mxu0 0.0
        %604 = vmatprep.subr.mxu0 0.0
        %605 = vmatpush1.xpose.msra.mxu0 0.0
        %606 = vmatprep.subr.mxu0 0.0
        %607 = vmatpush1.xpose.msra.mxu0 0.0
        %608 = vmatprep.subr.mxu0 0.0
        %609 = vmatpush1.xpose.msra.mxu0 0.0
        %610 = vmatprep.subr.mxu0 0.0
        %611 = vmatpush1.xpose.msra.mxu0 0.0
        %612 = vmatprep.subr.mxu0 0.0
        %613 = vmatpush1.xpose.msra.mxu0 0.0
        %614 = vmatprep.subr.mxu0 0.0
        %615 = vmatpush1.xpose.msra.mxu0 0.0
        %616 = vmatprep.subr.mxu0 0.0
        %617 = vmatpush1.xpose.msra.mxu0 0.0
        %618 = vmatprep.subr.mxu0 0.0
        %619 = vmatpush1.xpose.msra.mxu0 0.0
        %620 = vmatprep.subr.mxu0 0.0
        %621 = vmatpush1.xpose.msra.mxu0 0.0
        %622 = vmatprep.mubr.f32.mxu0 %v205
        %623 = vmatmul.mubr.f32.gmra.mrb[0].mxu0 %v201
        %v624 = vpop.f32.mrb[0].mxu0
        %v625 = vadd.f32 0.0, %v624
        %v626 = vpop.f32.mrb[0].mxu0
        %627 = vdwg.mxu0
        %628 = vmatprep.subr.mxu0 %v189
        %629 = vmatpush1.xpose.msra.mxu0 %v188
        %630 = vmatprep.subr.mxu0 %v191
        %631 = vmatpush1.xpose.msra.mxu0 %v190
        %632 = vmatprep.subr.mxu0 0.0
        %633 = vmatpush1.xpose.msra.mxu0 0.0
        %634 = vmatprep.subr.mxu0 0.0
        %635 = vmatpush1.xpose.msra.mxu0 0.0
        %636 = vmatprep.subr.mxu0 0.0
        %637 = vmatpush1.xpose.msra.mxu0 0.0
        %638 = vmatprep.subr.mxu0 0.0
        %639 = vmatpush1.xpose.msra.mxu0 0.0
        %640 = vmatprep.subr.mxu0 0.0
        %641 = vmatpush1.xpose.msra.mxu0 0.0
        %642 = vmatprep.subr.mxu0 0.0
        %643 = vmatpush1.xpose.msra.mxu0 0.0
        %644 = vmatprep.subr.mxu0 0.0
        %645 = vmatpush1.xpose.msra.mxu0 0.0
        %646 = vmatprep.subr.mxu0 0.0
        %647 = vmatpush1.xpose.msra.mxu0 0.0
        %648 = vmatprep.subr.mxu0 0.0
        %649 = vmatpush1.xpose.msra.mxu0 0.0
        %650 = vmatprep.subr.mxu0 0.0
        %651 = vmatpush1.xpose.msra.mxu0 0.0
        %652 = vmatprep.subr.mxu0 0.0
        %653 = vmatpush1.xpose.msra.mxu0 0.0
        %654 = vmatprep.subr.mxu0 0.0
        %655 = vmatpush1.xpose.msra.mxu0 0.0
        %656 = vmatprep.subr.mxu0 0.0
        %657 = vmatpush1.xpose.msra.mxu0 0.0
        %658 = vmatprep.subr.mxu0 0.0
        %659 = vmatpush1.xpose.msra.mxu0 0.0
        %660 = vmatprep.subr.mxu0 0.0
        %661 = vmatpush1.xpose.msra.mxu0 0.0
        %662 = vmatprep.subr.mxu0 0.0
        %663 = vmatpush1.xpose.msra.mxu0 0.0
        %664 = vmatprep.subr.mxu0 0.0
        %665 = vmatpush1.xpose.msra.mxu0 0.0
        %666 = vmatprep.subr.mxu0 0.0
        %667 = vmatpush1.xpose.msra.mxu0 0.0
        %668 = vmatprep.subr.mxu0 0.0
        %669 = vmatpush1.xpose.msra.mxu0 0.0
        %670 = vmatprep.subr.mxu0 0.0
        %671 = vmatpush1.xpose.msra.mxu0 0.0
        %672 = vmatprep.subr.mxu0 0.0
        %673 = vmatpush1.xpose.msra.mxu0 0.0
        %674 = vmatprep.subr.mxu0 0.0
        %675 = vmatpush1.xpose.msra.mxu0 0.0
        %676 = vmatprep.subr.mxu0 0.0
        %677 = vmatpush1.xpose.msra.mxu0 0.0
        %678 = vmatprep.subr.mxu0 0.0
        %679 = vmatpush1.xpose.msra.mxu0 0.0
        %680 = vmatprep.subr.mxu0 0.0
        %681 = vmatpush1.xpose.msra.mxu0 0.0
        %682 = vmatprep.subr.mxu0 0.0
        %683 = vmatpush1.xpose.msra.mxu0 0.0
        %684 = vmatprep.subr.mxu0 0.0
        %685 = vmatpush1.xpose.msra.mxu0 0.0
        %686 = vmatprep.subr.mxu0 0.0
        %687 = vmatpush1.xpose.msra.mxu0 0.0
        %688 = vmatprep.subr.mxu0 0.0
        %689 = vmatpush1.xpose.msra.mxu0 0.0
        %690 = vmatprep.subr.mxu0 0.0
        %691 = vmatpush1.xpose.msra.mxu0 0.0
        %692 = vmatprep.mubr.f32.mxu0 %v205
        %693 = vmatmul.mubr.f32.gmra.mrb[0].mxu0 %v201
        %v694 = vpop.f32.mrb[0].mxu0
        %v695 = vadd.f32 0.0, %v694
        %v696 = vpop.f32.mrb[0].mxu0
        %697 = vdwg.mxu0
        %698 = vmatprep.subr.mxu0 %v193
        %699 = vmatpush1.xpose.msra.mxu0 %v192
        %700 = vmatprep.subr.mxu0 %v195
        %701 = vmatpush1.xpose.msra.mxu0 %v194
        %702 = vmatprep.subr.mxu0 0.0
        %703 = vmatpush1.xpose.msra.mxu0 0.0
        %704 = vmatprep.subr.mxu0 0.0
        %705 = vmatpush1.xpose.msra.mxu0 0.0
        %706 = vmatprep.subr.mxu0 0.0
        %707 = vmatpush1.xpose.msra.mxu0 0.0
        %708 = vmatprep.subr.mxu0 0.0
        %709 = vmatpush1.xpose.msra.mxu0 0.0
        %710 = vmatprep.subr.mxu0 0.0
        %711 = vmatpush1.xpose.msra.mxu0 0.0
        %712 = vmatprep.subr.mxu0 0.0
        %713 = vmatpush1.xpose.msra.mxu0 0.0
        %714 = vmatprep.subr.mxu0 0.0
        %715 = vmatpush1.xpose.msra.mxu0 0.0
        %716 = vmatprep.subr.mxu0 0.0
        %717 = vmatpush1.xpose.msra.mxu0 0.0
        %718 = vmatprep.subr.mxu0 0.0
        %719 = vmatpush1.xpose.msra.mxu0 0.0
        %720 = vmatprep.subr.mxu0 0.0
        %721 = vmatpush1.xpose.msra.mxu0 0.0
        %722 = vmatprep.subr.mxu0 0.0
        %723 = vmatpush1.xpose.msra.mxu0 0.0
        %724 = vmatprep.subr.mxu0 0.0
        %725 = vmatpush1.xpose.msra.mxu0 0.0
        %726 = vmatprep.subr.mxu0 0.0
        %727 = vmatpush1.xpose.msra.mxu0 0.0
        %728 = vmatprep.subr.mxu0 0.0
        %729 = vmatpush1.xpose.msra.mxu0 0.0
        %730 = vmatprep.subr.mxu0 0.0
        %731 = vmatpush1.xpose.msra.mxu0 0.0
        %732 = vmatprep.subr.mxu0 0.0
        %733 = vmatpush1.xpose.msra.mxu0 0.0
        %734 = vmatprep.subr.mxu0 0.0
        %735 = vmatpush1.xpose.msra.mxu0 0.0
        %736 = vmatprep.subr.mxu0 0.0
        %737 = vmatpush1.xpose.msra.mxu0 0.0
        %738 = vmatprep.subr.mxu0 0.0
        %739 = vmatpush1.xpose.msra.mxu0 0.0
        %740 = vmatprep.subr.mxu0 0.0
        %741 = vmatpush1.xpose.msra.mxu0 0.0
        %742 = vmatprep.subr.mxu0 0.0
        %743 = vmatpush1.xpose.msra.mxu0 0.0
        %744 = vmatprep.subr.mxu0 0.0
        %745 = vmatpush1.xpose.msra.mxu0 0.0
        %746 = vmatprep.subr.mxu0 0.0
        %747 = vmatpush1.xpose.msra.mxu0 0.0
        %748 = vmatprep.subr.mxu0 0.0
        %749 = vmatpush1.xpose.msra.mxu0 0.0
        %750 = vmatprep.subr.mxu0 0.0
        %751 = vmatpush1.xpose.msra.mxu0 0.0
        %752 = vmatprep.subr.mxu0 0.0
        %753 = vmatpush1.xpose.msra.mxu0 0.0
        %754 = vmatprep.subr.mxu0 0.0
        %755 = vmatpush1.xpose.msra.mxu0 0.0
        %756 = vmatprep.subr.mxu0 0.0
        %757 = vmatpush1.xpose.msra.mxu0 0.0
        %758 = vmatprep.subr.mxu0 0.0
        %759 = vmatpush1.xpose.msra.mxu0 0.0
        %760 = vmatprep.subr.mxu0 0.0
        %761 = vmatpush1.xpose.msra.mxu0 0.0
        %762 = vmatprep.mubr.f32.mxu0 %v205
        %763 = vmatmul.mubr.f32.gmra.mrb[0].mxu0 %v201
        %v764 = vpop.f32.mrb[0].mxu0
        %v765 = vadd.f32 0.0, %v764
        %v766 = vpop.f32.mrb[0].mxu0
        %767 = vdwg.mxu0
        %v776 = vrot.slane %v345, 7
        %vm777 = vcmask 1041409
        %v778 = vsel %vm777, %v776, %v275
        %v779 = vrot.slane %v415, 6
        %vm780 = vcmask 1042434
        %v781 = vsel %vm780, %v779, %v778
        %v782 = vrot.slane %v485, 5
        %vm783 = vcmask 1043459
        %v784 = vsel %vm783, %v782, %v781
        %v785 = vrot.slane %v555, 4
        %vm786 = vcmask 1044484
        %v787 = vsel %vm786, %v785, %v784
        %v788 = vrot.slane %v625, 3
        %vm789 = vcmask 1045509
        %v790 = vsel %vm789, %v788, %v787
        %v791 = vrot.slane %v695, 2
        %vm792 = vcmask 1046534
        %v793 = vsel %vm792, %v791, %v790
        %v794 = vrot.slane %v765, 1
        %vm795 = vcmask 1047559
        %v796 = vsel %vm795, %v794, %v793
        %vm798 = vcmask 130048
        %v799 = vsel %vm798, %v796, -inf
        %800 = vmax.xlane.f32.xlu0 %v799
        %v801 = vpop.xlane.xlu0 %800
        %v803 = vrot.slane %v801, 1
        %v804 = vrot.slane %v801, 2
        %v805 = vrot.slane %v801, 3
        %v806 = vrot.slane %v801, 4
        %v807 = vrot.slane %v801, 5
        %v808 = vrot.slane %v801, 6
        %v809 = vrot.slane %v801, 7
        %v818 = vsub.f32 %v275, %v801
        %v819 = vsub.f32 %v345, %v803
        %v820 = vsub.f32 %v415, %v804
        %v821 = vsub.f32 %v485, %v805
        %v822 = vsub.f32 %v555, %v806
        %v823 = vsub.f32 %v625, %v807
        %v824 = vsub.f32 %v695, %v808
        %v825 = vsub.f32 %v765, %v809
        %v826 = vmul.f32 %v818, 1.442695
        %v827 = vpow.pop %v826
        %v828 = vmul.f32 %v819, 1.442695
        %v829 = vpow.pop %v828
        %v830 = vmul.f32 %v820, 1.442695
        %v831 = vpow.pop %v830
        %v832 = vmul.f32 %v821, 1.442695
        %v833 = vpow.pop %v832
        %v834 = vmul.f32 %v822, 1.442695
        %v835 = vpow.pop %v834
        %v836 = vmul.f32 %v823, 1.442695
        %v837 = vpow.pop %v836
        %v838 = vmul.f32 %v824, 1.442695
        %v839 = vpow.pop %v838
        %v840 = vmul.f32 %v825, 1.442695
        %v841 = vpow.pop %v840
        %v850 = vrot.slane %v829, 7
        %v851 = vsel %vm777, %v850, %v827
        %v852 = vrot.slane %v831, 6
        %v853 = vsel %vm780, %v852, %v851
        %v854 = vrot.slane %v833, 5
        %v855 = vsel %vm783, %v854, %v853
        %v856 = vrot.slane %v835, 4
        %v857 = vsel %vm786, %v856, %v855
        %v858 = vrot.slane %v837, 3
        %v859 = vsel %vm789, %v858, %v857
        %v860 = vrot.slane %v839, 2
        %v861 = vsel %vm792, %v860, %v859
        %v862 = vrot.slane %v841, 1
        %v863 = vsel %vm795, %v862, %v861
        %v865 = vsel %vm798, %v863, 0.0
        %866 = vadd.xlane.f32.xlu0 %v865
        %v867 = vpop.xlane.xlu0 %866
        %v868 = vrcp.pop %v867
        %v870 = vrot.slane %v868, 1
        %v871 = vrot.slane %v868, 2
        %v872 = vrot.slane %v868, 3
        %v873 = vrot.slane %v868, 4
        %v874 = vrot.slane %v868, 5
        %v875 = vrot.slane %v868, 6
        %v876 = vrot.slane %v868, 7
        %v885 = vmul.f32 %v827, %v868
        %v886 = vmul.f32 %v829, %v870
        %v887 = vmul.f32 %v831, %v871
        %v888 = vmul.f32 %v833, %v872
        %v889 = vmul.f32 %v835, %v873
        %v890 = vmul.f32 %v837, %v874
        %v891 = vmul.f32 %v839, %v875
        %v892 = vmul.f32 %v841, %v876
        %v894 = vsel %vm798, %v885, 0
        %896 = vmatprep.subr.mxu0 %v165
        %897 = vmatpush1.msra.mxu0 %v164
        %898 = vmatprep.subr.mxu0 %v167
        %899 = vmatpush1.msra.mxu0 %v166
        %900 = vmatprep.subr.mxu0 0.0
        %901 = vmatpush1.msra.mxu0 0.0
        %902 = vmatprep.subr.mxu0 0.0
        %903 = vmatpush1.msra.mxu0 0.0
        %904 = vmatprep.subr.mxu0 0.0
        %905 = vmatpush1.msra.mxu0 0.0
        %906 = vmatprep.subr.mxu0 0.0
        %907 = vmatpush1.msra.mxu0 0.0
        %908 = vmatprep.subr.mxu0 0.0
        %909 = vmatpush1.msra.mxu0 0.0
        %910 = vmatprep.subr.mxu0 0.0
        %911 = vmatpush1.msra.mxu0 0.0
        %912 = vmatprep.subr.mxu0 0.0
        %913 = vmatpush1.msra.mxu0 0.0
        %914 = vmatprep.subr.mxu0 0.0
        %915 = vmatpush1.msra.mxu0 0.0
        %916 = vmatprep.subr.mxu0 0.0
        %917 = vmatpush1.msra.mxu0 0.0
        %918 = vmatprep.subr.mxu0 0.0
        %919 = vmatpush1.msra.mxu0 0.0
        %920 = vmatprep.subr.mxu0 0.0
        %921 = vmatpush1.msra.mxu0 0.0
        %922 = vmatprep.subr.mxu0 0.0
        %923 = vmatpush1.msra.mxu0 0.0
        %924 = vmatprep.subr.mxu0 0.0
        %925 = vmatpush1.msra.mxu0 0.0
        %926 = vmatprep.subr.mxu0 0.0
        %927 = vmatpush1.msra.mxu0 0.0
        %928 = vmatprep.subr.mxu0 0.0
        %929 = vmatpush1.msra.mxu0 0.0
        %930 = vmatprep.subr.mxu0 0.0
        %931 = vmatpush1.msra.mxu0 0.0
        %932 = vmatprep.subr.mxu0 0.0
        %933 = vmatpush1.msra.mxu0 0.0
        %934 = vmatprep.subr.mxu0 0.0
        %935 = vmatpush1.msra.mxu0 0.0
        %936 = vmatprep.subr.mxu0 0.0
        %937 = vmatpush1.msra.mxu0 0.0
        %938 = vmatprep.subr.mxu0 0.0
        %939 = vmatpush1.msra.mxu0 0.0
        %940 = vmatprep.subr.mxu0 0.0
        %941 = vmatpush1.msra.mxu0 0.0
        %942 = vmatprep.subr.mxu0 0.0
        %943 = vmatpush1.msra.mxu0 0.0
        %944 = vmatprep.subr.mxu0 0.0
        %945 = vmatpush1.msra.mxu0 0.0
        %946 = vmatprep.subr.mxu0 0.0
        %947 = vmatpush1.msra.mxu0 0.0
        %948 = vmatprep.subr.mxu0 0.0
        %949 = vmatpush1.msra.mxu0 0.0
        %950 = vmatprep.subr.mxu0 0.0
        %951 = vmatpush1.msra.mxu0 0.0
        %952 = vmatprep.subr.mxu0 0.0
        %953 = vmatpush1.msra.mxu0 0.0
        %954 = vmatprep.subr.mxu0 0.0
        %955 = vmatpush1.msra.mxu0 0.0
        %956 = vmatprep.subr.mxu0 0.0
        %957 = vmatpush1.msra.mxu0 0.0
        %958 = vmatprep.subr.mxu0 0.0
        %959 = vmatpush1.msra.mxu0 0.0
        %960 = vmatprep.mubr.f32.mxu0 0.0
        %961 = vmatmul.mubr.f32.gmra.mrb[0].mxu0 %v894
        %v962 = vpop.f32.mrb[0].mxu0
        %v963 = vadd.f32 0.0, %v962
        %v964 = vpop.f32.mrb[0].mxu0
        %v965 = vadd.f32 0.0, %v964
        %966 = vdwg.mxu0
        %v968 = vsel %vm798, %v886, 0
        %970 = vmatprep.subr.mxu0 %v169
        %971 = vmatpush1.msra.mxu0 %v168
        %972 = vmatprep.subr.mxu0 %v171
        %973 = vmatpush1.msra.mxu0 %v170
        %974 = vmatprep.subr.mxu0 0.0
        %975 = vmatpush1.msra.mxu0 0.0
        %976 = vmatprep.subr.mxu0 0.0
        %977 = vmatpush1.msra.mxu0 0.0
        %978 = vmatprep.subr.mxu0 0.0
        %979 = vmatpush1.msra.mxu0 0.0
        %980 = vmatprep.subr.mxu0 0.0
        %981 = vmatpush1.msra.mxu0 0.0
        %982 = vmatprep.subr.mxu0 0.0
        %983 = vmatpush1.msra.mxu0 0.0
        %984 = vmatprep.subr.mxu0 0.0
        %985 = vmatpush1.msra.mxu0 0.0
        %986 = vmatprep.subr.mxu0 0.0
        %987 = vmatpush1.msra.mxu0 0.0
        %988 = vmatprep.subr.mxu0 0.0
        %989 = vmatpush1.msra.mxu0 0.0
        %990 = vmatprep.subr.mxu0 0.0
        %991 = vmatpush1.msra.mxu0 0.0
        %992 = vmatprep.subr.mxu0 0.0
        %993 = vmatpush1.msra.mxu0 0.0
        %994 = vmatprep.subr.mxu0 0.0
        %995 = vmatpush1.msra.mxu0 0.0
        %996 = vmatprep.subr.mxu0 0.0
        %997 = vmatpush1.msra.mxu0 0.0
        %998 = vmatprep.subr.mxu0 0.0
        %999 = vmatpush1.msra.mxu0 0.0
        %1000 = vmatprep.subr.mxu0 0.0
        %1001 = vmatpush1.msra.mxu0 0.0
        %1002 = vmatprep.subr.mxu0 0.0
        %1003 = vmatpush1.msra.mxu0 0.0
        %1004 = vmatprep.subr.mxu0 0.0
        %1005 = vmatpush1.msra.mxu0 0.0
        %1006 = vmatprep.subr.mxu0 0.0
        %1007 = vmatpush1.msra.mxu0 0.0
        %1008 = vmatprep.subr.mxu0 0.0
        %1009 = vmatpush1.msra.mxu0 0.0
        %1010 = vmatprep.subr.mxu0 0.0
        %1011 = vmatpush1.msra.mxu0 0.0
        %1012 = vmatprep.subr.mxu0 0.0
        %1013 = vmatpush1.msra.mxu0 0.0
        %1014 = vmatprep.subr.mxu0 0.0
        %1015 = vmatpush1.msra.mxu0 0.0
        %1016 = vmatprep.subr.mxu0 0.0
        %1017 = vmatpush1.msra.mxu0 0.0
        %1018 = vmatprep.subr.mxu0 0.0
        %1019 = vmatpush1.msra.mxu0 0.0
        %1020 = vmatprep.subr.mxu0 0.0
        %1021 = vmatpush1.msra.mxu0 0.0
        %1022 = vmatprep.subr.mxu0 0.0
        %1023 = vmatpush1.msra.mxu0 0.0
        %1024 = vmatprep.subr.mxu0 0.0
        %1025 = vmatpush1.msra.mxu0 0.0
        %1026 = vmatprep.subr.mxu0 0.0
        %1027 = vmatpush1.msra.mxu0 0.0
        %1028 = vmatprep.subr.mxu0 0.0
        %1029 = vmatpush1.msra.mxu0 0.0
        %1030 = vmatprep.subr.mxu0 0.0
        %1031 = vmatpush1.msra.mxu0 0.0
        %1032 = vmatprep.subr.mxu0 0.0
        %1033 = vmatpush1.msra.mxu0 0.0
        %1034 = vmatprep.mubr.f32.mxu0 0.0
        %1035 = vmatmul.mubr.f32.gmra.mrb[0].mxu0 %v968
        %v1036 = vpop.f32.mrb[0].mxu0
        %v1037 = vadd.f32 0.0, %v1036
        %v1038 = vpop.f32.mrb[0].mxu0
        %v1039 = vadd.f32 0.0, %v1038
        %1040 = vdwg.mxu0
        %v1042 = vsel %vm798, %v887, 0
        %1044 = vmatprep.subr.mxu0 %v173
        %1045 = vmatpush1.msra.mxu0 %v172
        %1046 = vmatprep.subr.mxu0 %v175
        %1047 = vmatpush1.msra.mxu0 %v174
        %1048 = vmatprep.subr.mxu0 0.0
        %1049 = vmatpush1.msra.mxu0 0.0
        %1050 = vmatprep.subr.mxu0 0.0
        %1051 = vmatpush1.msra.mxu0 0.0
        %1052 = vmatprep.subr.mxu0 0.0
        %1053 = vmatpush1.msra.mxu0 0.0
        %1054 = vmatprep.subr.mxu0 0.0
        %1055 = vmatpush1.msra.mxu0 0.0
        %1056 = vmatprep.subr.mxu0 0.0
        %1057 = vmatpush1.msra.mxu0 0.0
        %1058 = vmatprep.subr.mxu0 0.0
        %1059 = vmatpush1.msra.mxu0 0.0
        %1060 = vmatprep.subr.mxu0 0.0
        %1061 = vmatpush1.msra.mxu0 0.0
        %1062 = vmatprep.subr.mxu0 0.0
        %1063 = vmatpush1.msra.mxu0 0.0
        %1064 = vmatprep.subr.mxu0 0.0
        %1065 = vmatpush1.msra.mxu0 0.0
        %1066 = vmatprep.subr.mxu0 0.0
        %1067 = vmatpush1.msra.mxu0 0.0
        %1068 = vmatprep.subr.mxu0 0.0
        %1069 = vmatpush1.msra.mxu0 0.0
        %1070 = vmatprep.subr.mxu0 0.0
        %1071 = vmatpush1.msra.mxu0 0.0
        %1072 = vmatprep.subr.mxu0 0.0
        %1073 = vmatpush1.msra.mxu0 0.0
        %1074 = vmatprep.subr.mxu0 0.0
        %1075 = vmatpush1.msra.mxu0 0.0
        %1076 = vmatprep.subr.mxu0 0.0
        %1077 = vmatpush1.msra.mxu0 0.0
        %1078 = vmatprep.subr.mxu0 0.0
        %1079 = vmatpush1.msra.mxu0 0.0
        %1080 = vmatprep.subr.mxu0 0.0
        %1081 = vmatpush1.msra.mxu0 0.0
        %1082 = vmatprep.subr.mxu0 0.0
        %1083 = vmatpush1.msra.mxu0 0.0
        %1084 = vmatprep.subr.mxu0 0.0
        %1085 = vmatpush1.msra.mxu0 0.0
        %1086 = vmatprep.subr.mxu0 0.0
        %1087 = vmatpush1.msra.mxu0 0.0
        %1088 = vmatprep.subr.mxu0 0.0
        %1089 = vmatpush1.msra.mxu0 0.0
        %1090 = vmatprep.subr.mxu0 0.0
        %1091 = vmatpush1.msra.mxu0 0.0
        %1092 = vmatprep.subr.mxu0 0.0
        %1093 = vmatpush1.msra.mxu0 0.0
        %1094 = vmatprep.subr.mxu0 0.0
        %1095 = vmatpush1.msra.mxu0 0.0
        %1096 = vmatprep.subr.mxu0 0.0
        %1097 = vmatpush1.msra.mxu0 0.0
        %1098 = vmatprep.subr.mxu0 0.0
        %1099 = vmatpush1.msra.mxu0 0.0
        %1100 = vmatprep.subr.mxu0 0.0
        %1101 = vmatpush1.msra.mxu0 0.0
        %1102 = vmatprep.subr.mxu0 0.0
        %1103 = vmatpush1.msra.mxu0 0.0
        %1104 = vmatprep.subr.mxu0 0.0
        %1105 = vmatpush1.msra.mxu0 0.0
        %1106 = vmatprep.subr.mxu0 0.0
        %1107 = vmatpush1.msra.mxu0 0.0
        %1108 = vmatprep.mubr.f32.mxu0 0.0
        %1109 = vmatmul.mubr.f32.gmra.mrb[0].mxu0 %v1042
        %v1110 = vpop.f32.mrb[0].mxu0
        %v1111 = vadd.f32 0.0, %v1110
        %v1112 = vpop.f32.mrb[0].mxu0
        %v1113 = vadd.f32 0.0, %v1112
        %1114 = vdwg.mxu0
        %v1116 = vsel %vm798, %v888, 0
        %1118 = vmatprep.subr.mxu0 %v177
        %1119 = vmatpush1.msra.mxu0 %v176
        %1120 = vmatprep.subr.mxu0 %v179
        %1121 = vmatpush1.msra.mxu0 %v178
        %1122 = vmatprep.subr.mxu0 0.0
        %1123 = vmatpush1.msra.mxu0 0.0
        %1124 = vmatprep.subr.mxu0 0.0
        %1125 = vmatpush1.msra.mxu0 0.0
        %1126 = vmatprep.subr.mxu0 0.0
        %1127 = vmatpush1.msra.mxu0 0.0
        %1128 = vmatprep.subr.mxu0 0.0
        %1129 = vmatpush1.msra.mxu0 0.0
        %1130 = vmatprep.subr.mxu0 0.0
        %1131 = vmatpush1.msra.mxu0 0.0
        %1132 = vmatprep.subr.mxu0 0.0
        %1133 = vmatpush1.msra.mxu0 0.0
        %1134 = vmatprep.subr.mxu0 0.0
        %1135 = vmatpush1.msra.mxu0 0.0
        %1136 = vmatprep.subr.mxu0 0.0
        %1137 = vmatpush1.msra.mxu0 0.0
        %1138 = vmatprep.subr.mxu0 0.0
        %1139 = vmatpush1.msra.mxu0 0.0
        %1140 = vmatprep.subr.mxu0 0.0
        %1141 = vmatpush1.msra.mxu0 0.0
        %1142 = vmatprep.subr.mxu0 0.0
        %1143 = vmatpush1.msra.mxu0 0.0
        %1144 = vmatprep.subr.mxu0 0.0
        %1145 = vmatpush1.msra.mxu0 0.0
        %1146 = vmatprep.subr.mxu0 0.0
        %1147 = vmatpush1.msra.mxu0 0.0
        %1148 = vmatprep.subr.mxu0 0.0
        %1149 = vmatpush1.msra.mxu0 0.0
        %1150 = vmatprep.subr.mxu0 0.0
        %1151 = vmatpush1.msra.mxu0 0.0
        %1152 = vmatprep.subr.mxu0 0.0
        %1153 = vmatpush1.msra.mxu0 0.0
        %1154 = vmatprep.subr.mxu0 0.0
        %1155 = vmatpush1.msra.mxu0 0.0
        %1156 = vmatprep.subr.mxu0 0.0
        %1157 = vmatpush1.msra.mxu0 0.0
        %1158 = vmatprep.subr.mxu0 0.0
        %1159 = vmatpush1.msra.mxu0 0.0
        %1160 = vmatprep.subr.mxu0 0.0
        %1161 = vmatpush1.msra.mxu0 0.0
        %1162 = vmatprep.subr.mxu0 0.0
        %1163 = vmatpush1.msra.mxu0 0.0
        %1164 = vmatprep.subr.mxu0 0.0
        %1165 = vmatpush1.msra.mxu0 0.0
        %1166 = vmatprep.subr.mxu0 0.0
        %1167 = vmatpush1.msra.mxu0 0.0
        %1168 = vmatprep.subr.mxu0 0.0
        %1169 = vmatpush1.msra.mxu0 0.0
        %1170 = vmatprep.subr.mxu0 0.0
        %1171 = vmatpush1.msra.mxu0 0.0
        %1172 = vmatprep.subr.mxu0 0.0
        %1173 = vmatpush1.msra.mxu0 0.0
        %1174 = vmatprep.subr.mxu0 0.0
        %1175 = vmatpush1.msra.mxu0 0.0
        %1176 = vmatprep.subr.mxu0 0.0
        %1177 = vmatpush1.msra.mxu0 0.0
        %1178 = vmatprep.subr.mxu0 0.0
        %1179 = vmatpush1.msra.mxu0 0.0
        %1180 = vmatprep.subr.mxu0 0.0
        %1181 = vmatpush1.msra.mxu0 0.0
        %1182 = vmatprep.mubr.f32.mxu0 0.0
        %1183 = vmatmul.mubr.f32.gmra.mrb[0].mxu0 %v1116
        %v1184 = vpop.f32.mrb[0].mxu0
        %v1185 = vadd.f32 0.0, %v1184
        %v1186 = vpop.f32.mrb[0].mxu0
        %v1187 = vadd.f32 0.0, %v1186
        %1188 = vdwg.mxu0
        %v1190 = vsel %vm798, %v889, 0
        %1192 = vmatprep.subr.mxu0 %v181
        %1193 = vmatpush1.msra.mxu0 %v180
        %1194 = vmatprep.subr.mxu0 %v183
        %1195 = vmatpush1.msra.mxu0 %v182
        %1196 = vmatprep.subr.mxu0 0.0
        %1197 = vmatpush1.msra.mxu0 0.0
        %1198 = vmatprep.subr.mxu0 0.0
        %1199 = vmatpush1.msra.mxu0 0.0
        %1200 = vmatprep.subr.mxu0 0.0
        %1201 = vmatpush1.msra.mxu0 0.0
        %1202 = vmatprep.subr.mxu0 0.0
        %1203 = vmatpush1.msra.mxu0 0.0
        %1204 = vmatprep.subr.mxu0 0.0
        %1205 = vmatpush1.msra.mxu0 0.0
        %1206 = vmatprep.subr.mxu0 0.0
        %1207 = vmatpush1.msra.mxu0 0.0
        %1208 = vmatprep.subr.mxu0 0.0
        %1209 = vmatpush1.msra.mxu0 0.0
        %1210 = vmatprep.subr.mxu0 0.0
        %1211 = vmatpush1.msra.mxu0 0.0
        %1212 = vmatprep.subr.mxu0 0.0
        %1213 = vmatpush1.msra.mxu0 0.0
        %1214 = vmatprep.subr.mxu0 0.0
        %1215 = vmatpush1.msra.mxu0 0.0
        %1216 = vmatprep.subr.mxu0 0.0
        %1217 = vmatpush1.msra.mxu0 0.0
        %1218 = vmatprep.subr.mxu0 0.0
        %1219 = vmatpush1.msra.mxu0 0.0
        %1220 = vmatprep.subr.mxu0 0.0
        %1221 = vmatpush1.msra.mxu0 0.0
        %1222 = vmatprep.subr.mxu0 0.0
        %1223 = vmatpush1.msra.mxu0 0.0
        %1224 = vmatprep.subr.mxu0 0.0
        %1225 = vmatpush1.msra.mxu0 0.0
        %1226 = vmatprep.subr.mxu0 0.0
        %1227 = vmatpush1.msra.mxu0 0.0
        %1228 = vmatprep.subr.mxu0 0.0
        %1229 = vmatpush1.msra.mxu0 0.0
        %1230 = vmatprep.subr.mxu0 0.0
        %1231 = vmatpush1.msra.mxu0 0.0
        %1232 = vmatprep.subr.mxu0 0.0
        %1233 = vmatpush1.msra.mxu0 0.0
        %1234 = vmatprep.subr.mxu0 0.0
        %1235 = vmatpush1.msra.mxu0 0.0
        %1236 = vmatprep.subr.mxu0 0.0
        %1237 = vmatpush1.msra.mxu0 0.0
        %1238 = vmatprep.subr.mxu0 0.0
        %1239 = vmatpush1.msra.mxu0 0.0
        %1240 = vmatprep.subr.mxu0 0.0
        %1241 = vmatpush1.msra.mxu0 0.0
        %1242 = vmatprep.subr.mxu0 0.0
        %1243 = vmatpush1.msra.mxu0 0.0
        %1244 = vmatprep.subr.mxu0 0.0
        %1245 = vmatpush1.msra.mxu0 0.0
        %1246 = vmatprep.subr.mxu0 0.0
        %1247 = vmatpush1.msra.mxu0 0.0
        %1248 = vmatprep.subr.mxu0 0.0
        %1249 = vmatpush1.msra.mxu0 0.0
        %1250 = vmatprep.subr.mxu0 0.0
        %1251 = vmatpush1.msra.mxu0 0.0
        %1252 = vmatprep.subr.mxu0 0.0
        %1253 = vmatpush1.msra.mxu0 0.0
        %1254 = vmatprep.subr.mxu0 0.0
        %1255 = vmatpush1.msra.mxu0 0.0
        %1256 = vmatprep.mubr.f32.mxu0 0.0
        %1257 = vmatmul.mubr.f32.gmra.mrb[0].mxu0 %v1190
        %v1258 = vpop.f32.mrb[0].mxu0
        %v1259 = vadd.f32 0.0, %v1258
        %v1260 = vpop.f32.mrb[0].mxu0
        %v1261 = vadd.f32 0.0, %v1260
        %1262 = vdwg.mxu0
        %v1264 = vsel %vm798, %v890, 0
        %1266 = vmatprep.subr.mxu0 %v185
        %1267 = vmatpush1.msra.mxu0 %v184
        %1268 = vmatprep.subr.mxu0 %v187
        %1269 = vmatpush1.msra.mxu0 %v186
        %1270 = vmatprep.subr.mxu0 0.0
        %1271 = vmatpush1.msra.mxu0 0.0
        %1272 = vmatprep.subr.mxu0 0.0
        %1273 = vmatpush1.msra.mxu0 0.0
        %1274 = vmatprep.subr.mxu0 0.0
        %1275 = vmatpush1.msra.mxu0 0.0
        %1276 = vmatprep.subr.mxu0 0.0
        %1277 = vmatpush1.msra.mxu0 0.0
        %1278 = vmatprep.subr.mxu0 0.0
        %1279 = vmatpush1.msra.mxu0 0.0
        %1280 = vmatprep.subr.mxu0 0.0
        %1281 = vmatpush1.msra.mxu0 0.0
        %1282 = vmatprep.subr.mxu0 0.0
        %1283 = vmatpush1.msra.mxu0 0.0
        %1284 = vmatprep.subr.mxu0 0.0
        %1285 = vmatpush1.msra.mxu0 0.0
        %1286 = vmatprep.subr.mxu0 0.0
        %1287 = vmatpush1.msra.mxu0 0.0
        %1288 = vmatprep.subr.mxu0 0.0
        %1289 = vmatpush1.msra.mxu0 0.0
        %1290 = vmatprep.subr.mxu0 0.0
        %1291 = vmatpush1.msra.mxu0 0.0
        %1292 = vmatprep.subr.mxu0 0.0
        %1293 = vmatpush1.msra.mxu0 0.0
        %1294 = vmatprep.subr.mxu0 0.0
        %1295 = vmatpush1.msra.mxu0 0.0
        %1296 = vmatprep.subr.mxu0 0.0
        %1297 = vmatpush1.msra.mxu0 0.0
        %1298 = vmatprep.subr.mxu0 0.0
        %1299 = vmatpush1.msra.mxu0 0.0
        %1300 = vmatprep.subr.mxu0 0.0
        %1301 = vmatpush1.msra.mxu0 0.0
        %1302 = vmatprep.subr.mxu0 0.0
        %1303 = vmatpush1.msra.mxu0 0.0
        %1304 = vmatprep.subr.mxu0 0.0
        %1305 = vmatpush1.msra.mxu0 0.0
        %1306 = vmatprep.subr.mxu0 0.0
        %1307 = vmatpush1.msra.mxu0 0.0
        %1308 = vmatprep.subr.mxu0 0.0
        %1309 = vmatpush1.msra.mxu0 0.0
        %1310 = vmatprep.subr.mxu0 0.0
        %1311 = vmatpush1.msra.mxu0 0.0
        %1312 = vmatprep.subr.mxu0 0.0
        %1313 = vmatpush1.msra.mxu0 0.0
        %1314 = vmatprep.subr.mxu0 0.0
        %1315 = vmatpush1.msra.mxu0 0.0
        %1316 = vmatprep.subr.mxu0 0.0
        %1317 = vmatpush1.msra.mxu0 0.0
        %1318 = vmatprep.subr.mxu0 0.0
        %1319 = vmatpush1.msra.mxu0 0.0
        %1320 = vmatprep.subr.mxu0 0.0
        %1321 = vmatpush1.msra.mxu0 0.0
        %1322 = vmatprep.subr.mxu0 0.0
        %1323 = vmatpush1.msra.mxu0 0.0
        %1324 = vmatprep.subr.mxu0 0.0
        %1325 = vmatpush1.msra.mxu0 0.0
        %1326 = vmatprep.subr.mxu0 0.0
        %1327 = vmatpush1.msra.mxu0 0.0
        %1328 = vmatprep.subr.mxu0 0.0
        %1329 = vmatpush1.msra.mxu0 0.0
        %1330 = vmatprep.mubr.f32.mxu0 0.0
        %1331 = vmatmul.mubr.f32.gmra.mrb[0].mxu0 %v1264
        %v1332 = vpop.f32.mrb[0].mxu0
        %v1333 = vadd.f32 0.0, %v1332
        %v1334 = vpop.f32.mrb[0].mxu0
        %v1335 = vadd.f32 0.0, %v1334
        %1336 = vdwg.mxu0
        %v1338 = vsel %vm798, %v891, 0
        %1340 = vmatprep.subr.mxu0 %v189
        %1341 = vmatpush1.msra.mxu0 %v188
        %1342 = vmatprep.subr.mxu0 %v191
        %1343 = vmatpush1.msra.mxu0 %v190
        %1344 = vmatprep.subr.mxu0 0.0
        %1345 = vmatpush1.msra.mxu0 0.0
        %1346 = vmatprep.subr.mxu0 0.0
        %1347 = vmatpush1.msra.mxu0 0.0
        %1348 = vmatprep.subr.mxu0 0.0
        %1349 = vmatpush1.msra.mxu0 0.0
        %1350 = vmatprep.subr.mxu0 0.0
        %1351 = vmatpush1.msra.mxu0 0.0
        %1352 = vmatprep.subr.mxu0 0.0
        %1353 = vmatpush1.msra.mxu0 0.0
        %1354 = vmatprep.subr.mxu0 0.0
        %1355 = vmatpush1.msra.mxu0 0.0
        %1356 = vmatprep.subr.mxu0 0.0
        %1357 = vmatpush1.msra.mxu0 0.0
        %1358 = vmatprep.subr.mxu0 0.0
        %1359 = vmatpush1.msra.mxu0 0.0
        %1360 = vmatprep.subr.mxu0 0.0
        %1361 = vmatpush1.msra.mxu0 0.0
        %1362 = vmatprep.subr.mxu0 0.0
        %1363 = vmatpush1.msra.mxu0 0.0
        %1364 = vmatprep.subr.mxu0 0.0
        %1365 = vmatpush1.msra.mxu0 0.0
        %1366 = vmatprep.subr.mxu0 0.0
        %1367 = vmatpush1.msra.mxu0 0.0
        %1368 = vmatprep.subr.mxu0 0.0
        %1369 = vmatpush1.msra.mxu0 0.0
        %1370 = vmatprep.subr.mxu0 0.0
        %1371 = vmatpush1.msra.mxu0 0.0
        %1372 = vmatprep.subr.mxu0 0.0
        %1373 = vmatpush1.msra.mxu0 0.0
        %1374 = vmatprep.subr.mxu0 0.0
        %1375 = vmatpush1.msra.mxu0 0.0
        %1376 = vmatprep.subr.mxu0 0.0
        %1377 = vmatpush1.msra.mxu0 0.0
        %1378 = vmatprep.subr.mxu0 0.0
        %1379 = vmatpush1.msra.mxu0 0.0
        %1380 = vmatprep.subr.mxu0 0.0
        %1381 = vmatpush1.msra.mxu0 0.0
        %1382 = vmatprep.subr.mxu0 0.0
        %1383 = vmatpush1.msra.mxu0 0.0
        %1384 = vmatprep.subr.mxu0 0.0
        %1385 = vmatpush1.msra.mxu0 0.0
        %1386 = vmatprep.subr.mxu0 0.0
        %1387 = vmatpush1.msra.mxu0 0.0
        %1388 = vmatprep.subr.mxu0 0.0
        %1389 = vmatpush1.msra.mxu0 0.0
        %1390 = vmatprep.subr.mxu0 0.0
        %1391 = vmatpush1.msra.mxu0 0.0
        %1392 = vmatprep.subr.mxu0 0.0
        %1393 = vmatpush1.msra.mxu0 0.0
        %1394 = vmatprep.subr.mxu0 0.0
        %1395 = vmatpush1.msra.mxu0 0.0
        %1396 = vmatprep.subr.mxu0 0.0
        %1397 = vmatpush1.msra.mxu0 0.0
        %1398 = vmatprep.subr.mxu0 0.0
        %1399 = vmatpush1.msra.mxu0 0.0
        %1400 = vmatprep.subr.mxu0 0.0
        %1401 = vmatpush1.msra.mxu0 0.0
        %1402 = vmatprep.subr.mxu0 0.0
        %1403 = vmatpush1.msra.mxu0 0.0
        %1404 = vmatprep.mubr.f32.mxu0 0.0
        %1405 = vmatmul.mubr.f32.gmra.mrb[0].mxu0 %v1338
        %v1406 = vpop.f32.mrb[0].mxu0
        %v1407 = vadd.f32 0.0, %v1406
        %v1408 = vpop.f32.mrb[0].mxu0
        %v1409 = vadd.f32 0.0, %v1408
        %1410 = vdwg.mxu0
        %v1412 = vsel %vm798, %v892, 0
        %1414 = vmatprep.subr.mxu0 %v193
        %1415 = vmatpush1.msra.mxu0 %v192
        %1416 = vmatprep.subr.mxu0 %v195
        %1417 = vmatpush1.msra.mxu0 %v194
        %1418 = vmatprep.subr.mxu0 0.0
        %1419 = vmatpush1.msra.mxu0 0.0
        %1420 = vmatprep.subr.mxu0 0.0
        %1421 = vmatpush1.msra.mxu0 0.0
        %1422 = vmatprep.subr.mxu0 0.0
        %1423 = vmatpush1.msra.mxu0 0.0
        %1424 = vmatprep.subr.mxu0 0.0
        %1425 = vmatpush1.msra.mxu0 0.0
        %1426 = vmatprep.subr.mxu0 0.0
        %1427 = vmatpush1.msra.mxu0 0.0
        %1428 = vmatprep.subr.mxu0 0.0
        %1429 = vmatpush1.msra.mxu0 0.0
        %1430 = vmatprep.subr.mxu0 0.0
        %1431 = vmatpush1.msra.mxu0 0.0
        %1432 = vmatprep.subr.mxu0 0.0
        %1433 = vmatpush1.msra.mxu0 0.0
        %1434 = vmatprep.subr.mxu0 0.0
        %1435 = vmatpush1.msra.mxu0 0.0
        %1436 = vmatprep.subr.mxu0 0.0
        %1437 = vmatpush1.msra.mxu0 0.0
        %1438 = vmatprep.subr.mxu0 0.0
        %1439 = vmatpush1.msra.mxu0 0.0
        %1440 = vmatprep.subr.mxu0 0.0
        %1441 = vmatpush1.msra.mxu0 0.0
        %1442 = vmatprep.subr.mxu0 0.0
        %1443 = vmatpush1.msra.mxu0 0.0
        %1444 = vmatprep.subr.mxu0 0.0
        %1445 = vmatpush1.msra.mxu0 0.0
        %1446 = vmatprep.subr.mxu0 0.0
        %1447 = vmatpush1.msra.mxu0 0.0
        %1448 = vmatprep.subr.mxu0 0.0
        %1449 = vmatpush1.msra.mxu0 0.0
        %1450 = vmatprep.subr.mxu0 0.0
        %1451 = vmatpush1.msra.mxu0 0.0
        %1452 = vmatprep.subr.mxu0 0.0
        %1453 = vmatpush1.msra.mxu0 0.0
        %1454 = vmatprep.subr.mxu0 0.0
        %1455 = vmatpush1.msra.mxu0 0.0
        %1456 = vmatprep.subr.mxu0 0.0
        %1457 = vmatpush1.msra.mxu0 0.0
        %1458 = vmatprep.subr.mxu0 0.0
        %1459 = vmatpush1.msra.mxu0 0.0
        %1460 = vmatprep.subr.mxu0 0.0
        %1461 = vmatpush1.msra.mxu0 0.0
        %1462 = vmatprep.subr.mxu0 0.0
        %1463 = vmatpush1.msra.mxu0 0.0
        %1464 = vmatprep.subr.mxu0 0.0
        %1465 = vmatpush1.msra.mxu0 0.0
        %1466 = vmatprep.subr.mxu0 0.0
        %1467 = vmatpush1.msra.mxu0 0.0
        %1468 = vmatprep.subr.mxu0 0.0
        %1469 = vmatpush1.msra.mxu0 0.0
        %1470 = vmatprep.subr.mxu0 0.0
        %1471 = vmatpush1.msra.mxu0 0.0
        %1472 = vmatprep.subr.mxu0 0.0
        %1473 = vmatpush1.msra.mxu0 0.0
        %1474 = vmatprep.subr.mxu0 0.0
        %1475 = vmatpush1.msra.mxu0 0.0
        %1476 = vmatprep.subr.mxu0 0.0
        %1477 = vmatpush1.msra.mxu0 0.0
        %1478 = vmatprep.mubr.f32.mxu0 0.0
        %1479 = vmatmul.mubr.f32.gmra.mrb[0].mxu0 %v1412
        %v1480 = vpop.f32.mrb[0].mxu0
        %v1481 = vadd.f32 0.0, %v1480
        %v1482 = vpop.f32.mrb[0].mxu0
        %v1483 = vadd.f32 0.0, %v1482
        %1484 = vdwg.mxu0
        %v1501 = vrot.slane %v1037, 7
        %v1502 = vsel %vm777, %v1501, %v963
        %v1503 = vrot.slane %v1111, 6
        %v1504 = vsel %vm780, %v1503, %v1502
        %v1505 = vrot.slane %v1185, 5
        %v1506 = vsel %vm783, %v1505, %v1504
        %v1507 = vrot.slane %v1259, 4
        %v1508 = vsel %vm786, %v1507, %v1506
        %v1509 = vrot.slane %v1333, 3
        %v1510 = vsel %vm789, %v1509, %v1508
        %v1511 = vrot.slane %v1407, 2
        %v1512 = vsel %vm792, %v1511, %v1510
        %v1513 = vrot.slane %v1481, 1
        %v1514 = vsel %vm795, %v1513, %v1512
        %v1515 = vrot.slane %v1039, 7
        %v1516 = vsel %vm777, %v1515, %v965
        %v1517 = vrot.slane %v1113, 6
        %v1518 = vsel %vm780, %v1517, %v1516
        %v1519 = vrot.slane %v1187, 5
        %v1520 = vsel %vm783, %v1519, %v1518
        %v1521 = vrot.slane %v1261, 4
        %v1522 = vsel %vm786, %v1521, %v1520
        %v1523 = vrot.slane %v1335, 3
        %v1524 = vsel %vm789, %v1523, %v1522
        %v1525 = vrot.slane %v1409, 2
        %v1526 = vsel %vm792, %v1525, %v1524
        %v1527 = vrot.slane %v1483, 1
        %v1528 = vsel %vm795, %v1527, %v1526
        %1531 = vst [vmem:[%s162] sm:$0xff] %v1514
        %1532 = vst [vmem:[%s162 + $0x8] sm:$0xff] %v1528
        %s1533 = sand.u32 %s74, 1
        %s1534 = scalar_lea.sflag [#allocation4], %s1533
        %s1535 = sand.u32 %s74, 1
        %s1536 = smul.addr %s1535, 16
        %s1537 = scalar_lea.vmem [#allocation5], %s1536
        // Predicated region
        $region33: #{tpu_custom_call.1} parent=27 // pred_check
          %p1538 = pneg %p84
        $region34: #{tpu_custom_call.1} parent=27 // pred_check_branch
          %1540 = sbr.rel (%p1538) target = $region36
        $region35: #{tpu_custom_call.1} parent=27 // pred_region
          %s1542 = ssub.s32 256, 256
          %1543 = vsyncadd %s1534, %s1542
          %s1544 = smul.addr %s19, 2
          %s1545 = smul.addr %s1544, 128
          %s1546 = scalar_lea.hbm %s2, %s1545
          %s1548 = sshll.u32 %s1537, 4
          %s1549 = int_to_ptr.vmem [resolvable:$true] %s1548
          %1551 = dma.vmem_to_hbm [thread:$0]  %s1549, 256, %s1546, %s1534
        $region36: #{tpu_custom_call.1} parent=27 // pred_fallthru
          _
      $region28: #{tpu_custom_call.1} parent=5 // pred_fallthru
        _
      %p1552 = scmp.le.s32.totalorder 2, %s14
      // Predicated region
      $region37: #{tpu_custom_call.1} parent=5 // pred_check
        %p1553 = pneg %p1552
      $region38: #{tpu_custom_call.1} parent=5 // pred_check_branch
        %1555 = sbr.rel (%p1553) target = $region40
      $region39: #{tpu_custom_call.1} parent=5 // pred_region
        %s1556 = ssub.s32 %s14, 2
        // Predicated region
        $region41: #{tpu_custom_call.1} parent=39 // pred_check
          %p1557 = pneg %p90
        $region42: #{tpu_custom_call.1} parent=39 // pred_check_branch
          %1559 = sbr.rel (%p1557) target = $region44
        $region43: #{tpu_custom_call.1} parent=39 // pred_region
          %s1560 = sand.u32 %s75, 1
          %s1561 = scalar_lea.sflag [#allocation4], %s1560
          %s1562 = sand.u32 %s75, 1
          %s1563 = smul.addr %s1562, 16
          %s1564 = scalar_lea.vmem [#allocation5], %s1563
          %1565 = dma.done %s1561, 256
        $region44: #{tpu_custom_call.1} parent=39 // pred_fallthru
          _
      $region40: #{tpu_custom_call.1} parent=5 // pred_fallthru
        _
    $region6: #{tpu_custom_call.1} parent=1 // loop_footer
      %s18 = sadd.s32 1, %s14
    $region7: #{tpu_custom_call.1} parent=1 // loop_footer_branch
      %13 = sbr.rel target = $region3
    $region8: #{tpu_custom_call.1} parent=1 // loop_exit
      _
    %1566 = vsyncpa [#allocation3], 1
    %s1567 = scalar_lea.sflag [#allocation3], 1
    %1568 = vsyncpa %s1567, 1
    %1569 = vsyncpa [#allocation4], 1
    %s1570 = scalar_lea.sflag [#allocation4], 1
    %1571 = vsyncpa %s1570, 1

</llo_original>
